<compile_context>
chip_gen: v7x
topology: tpu7x:2x2x1
jax: 0.10.0
libtpu: 0.0.40
codegen_flags: <defaults>
</compile_context>

<pallas_src>
import jax
import jax.numpy as jnp
from jax.experimental import pallas as pl
from jax.experimental.pallas import tpu as pltpu

EPS = 1e-5


def _bn_fused(t, gamma, beta, fold, unfold, inv_count):
    """Training-mode BatchNorm on a lane-fused slab (packed stats matmuls).

    t:      (M, W*C)   activations, fused layout (x-major, channel-minor), f32
    gamma:  (1, C)     affine scale
    beta:   (1, C)     affine shift
    fold:   (W*C, C)   tiled identity: folds per-(x,c) sums -> per-channel
    unfold: (C, W*C)   tiled identity: broadcasts per-channel -> fused lanes
    """
    s = jnp.sum(t, axis=0, keepdims=True)                             # (1, WC)
    ss = jnp.sum(t * t, axis=0, keepdims=True)                        # (1, WC)
    stats = jnp.concatenate([s, ss], axis=0)                          # (2, WC)
    stats_c = jnp.dot(stats, fold, preferred_element_type=jnp.float32)  # (2, C)
    mean = stats_c[0:1, :] * inv_count
    var = stats_c[1:2, :] * inv_count - mean * mean                   # biased
    scale_c = gamma * jax.lax.rsqrt(var + EPS)
    bias_c = beta - mean * scale_c
    sb = jnp.concatenate([scale_c, bias_c], axis=0)                   # (2, C)
    sb_l = jnp.dot(sb, unfold, preferred_element_type=jnp.float32)    # (2, WC)
    return t * sb_l[0:1, :] + sb_l[1:2, :]


def _make_kernel(H, Wsp):
    """Kernel factory; H (image height) and Wsp (image width) are static."""

    def kernel(x_ref, w1b_ref, w2c_ref, w3b_ref,
               g1_ref, b1_ref, g2_ref, b2_ref, g3_ref, b3_ref,
               fold_w_ref, unfold_w_ref, fold_o_ref, unfold_o_ref,
               out_ref):
        NH = x_ref.shape[0]                     # N*H
        inv_count = 1.0 / float(NH * Wsp)       # 1 / (N*H*W)

        x = x_ref[...]                          # (N*H, W*Cin), f32 identity

        # ---- conv1 (1x1, block-diag matmul, bf16 operands) -> bn1 -> relu --
        t1 = jnp.dot(x.astype(jnp.bfloat16), w1b_ref[...],
                     preferred_element_type=jnp.float32)      # (NH, W*width)
        t1 = jnp.maximum(
            _bn_fused(t1, g1_ref[...], b1_ref[...],
                      fold_w_ref[...], unfold_w_ref[...], inv_count), 0.0)

        # ---- conv2 (3x3, stride=1, pad=1) -> bn2 -> relu --------------------
        # Vertical taps via XLU sublane rolls + boundary-row masks (no padded
        # scratch); horizontal taps + side zero-padding are folded into the
        # banded weight; the three taps are one K=3*WC matmul.
        NHr, WCm = t1.shape
        N = NHr // H
        y = jax.lax.broadcasted_iota(jnp.int32, (N, H, WCm), 1).reshape(NHr, WCm)
        a0 = jnp.where(y == 0, 0.0, pltpu.roll(t1, 1, 0))          # row y-1
        a2 = jnp.where(y == H - 1, 0.0, pltpu.roll(t1, NHr - 1, 0))  # row y+1
        lhs = jnp.concatenate([a0, t1, a2], axis=1).astype(jnp.bfloat16)
        t2 = jnp.dot(lhs, w2c_ref[...], preferred_element_type=jnp.float32)
        t2 = jnp.maximum(
            _bn_fused(t2, g2_ref[...], b2_ref[...],
                      fold_w_ref[...], unfold_w_ref[...], inv_count), 0.0)

        # ---- conv3 (1x1, block-diag matmul) -> bn3 -> + identity -> relu ----
        t3 = jnp.dot(t2.astype(jnp.bfloat16), w3b_ref[...],
                     preferred_element_type=jnp.float32)      # (NH, W*Cout)
        t3 = _bn_fused(t3, g3_ref[...], b3_ref[...],
                       fold_o_ref[...], unfold_o_ref[...], inv_count)
        out_ref[...] = jnp.maximum(t3 + x, 0.0)   # lane-dense (N*H, W*Cout)

    return kernel


def prepare_params(params, W):
    """One-time weight preprocessing (hoisted out of the per-call path)."""
    w1, g1, b1, w2, g2, b2, w3, g3, b3 = params
    f32 = jnp.float32
    bf16 = jnp.bfloat16
    width = w1.shape[1]
    Cout = w3.shape[1]

    eye_w = jnp.eye(W, dtype=f32)
    # Block-diagonal 1x1 conv weights (bf16 halves the kron-inflated DMA).
    w1b = jnp.kron(eye_w, w1.astype(f32)).astype(bf16)        # (W*Cin,   W*width)
    w3b = jnp.kron(eye_w, w3.astype(f32)).astype(bf16)        # (W*width, W*Cout)
    # Banded matrices per vertical tap ky:
    #   w2b[ky][(x+kx-1)*width+ci, x*width+co] = w2[ky, kx, ci, co]
    # (out-of-range entries dropped == zero horizontal padding), then stacked
    # along K so conv2 is a single (NH, 3*WC) @ (3*WC, WC) matmul.
    w2b = [sum(jnp.kron(jnp.eye(W, k=1 - kx, dtype=f32), w2[ky, kx].astype(f32))
               for kx in range(3)) for ky in range(3)]
    w2cat = jnp.concatenate(w2b, axis=0).astype(bf16)         # (3*W*width, W*width)

    # Tiled-identity fold/unfold matrices for per-channel BN stats in the
    # fused-lane layout (kept f32: stats must stay exact).
    fold_w = jnp.tile(jnp.eye(width, dtype=f32), (W, 1))      # (W*width, width)
    unfold_w = fold_w.T                                       # (width,  W*width)
    fold_o = jnp.tile(jnp.eye(Cout, dtype=f32), (W, 1))       # (W*Cout, Cout)
    unfold_o = fold_o.T                                       # (Cout,   W*Cout)

    return (w1b, w2cat, w3b,
            g1.astype(f32).reshape(1, -1), b1.astype(f32).reshape(1, -1),
            g2.astype(f32).reshape(1, -1), b2.astype(f32).reshape(1, -1),
            g3.astype(f32).reshape(1, -1), b3.astype(f32).reshape(1, -1),
            fold_w, unfold_w, fold_o, unfold_o)


def bottleneck_forward(x_nchw, prepped):
    """x_nchw: (N, Cin, H, W) float32 (PyTorch layout). Returns NCHW."""
    (w1b, w2cat, w3b, g1, b1, g2, b2, g3, b3,
     fold_w, unfold_w, fold_o, unfold_o) = prepped
    N, Cin, H, W = x_nchw.shape
    width = fold_w.shape[1]
    Cout = fold_o.shape[1]
    assert Cin == Cout, "identity residual requires inplanes == planes*expansion"
    # Lane-density assumptions of the fused-slab layout.
    assert (W * Cin) % 128 == 0 and (W * width) % 128 == 0 and (W * Cout) % 128 == 0

    # Lane-dense input slab: NHWC flattened to (N*H, W*Cin).
    x_slab = jnp.transpose(x_nchw, (0, 2, 3, 1)).astype(jnp.float32)
    x_slab = x_slab.reshape(N * H, W * Cin)

    args = (x_slab, w1b, w2cat, w3b, g1, b1, g2, b2, g3, b3,
            fold_w, unfold_w, fold_o, unfold_o)

    def full(a):
        nd = a.ndim
        return pl.BlockSpec(a.shape, lambda i, _nd=nd: (0,) * _nd)

    out_slab = pl.pallas_call(
        _make_kernel(H, W),
        out_shape=jax.ShapeDtypeStruct((N * H, W * Cout), jnp.float32),
        grid=(1,),   # batch-stat BN needs the whole (small) batch in one step
        in_specs=[full(a) for a in args],
        out_specs=pl.BlockSpec((N * H, W * Cout), lambda i: (0, 0)),
        compiler_params=pltpu.CompilerParams(
            dimension_semantics=("arbitrary",)),
    )(*args)

    out = out_slab.reshape(N, H, W, Cout)
    return jnp.transpose(out, (0, 3, 1, 2))                   # -> NCHW


def reference_forward(x_nchw, params):
    """Pure-JAX f32 reference (lax convs) with the module's semantics."""
    w1, g1, b1, w2, g2, b2, w3, g3, b3 = params
    x = jnp.transpose(x_nchw, (0, 2, 3, 1))
    dn = ('NHWC', 'HWIO', 'NHWC')

    def bn(t, g, b):
        mean = jnp.mean(t, axis=(0, 1, 2), keepdims=True)
        var = jnp.mean((t - mean) ** 2, axis=(0, 1, 2), keepdims=True)
        return ((t - mean) * jax.lax.rsqrt(var + EPS)
                * g.reshape(1, 1, 1, -1) + b.reshape(1, 1, 1, -1))

    t = jax.lax.conv_general_dilated(x, w1.reshape(1, 1, *w1.shape),
                                     (1, 1), 'VALID', dimension_numbers=dn)
    t = jax.nn.relu(bn(t, g1, b1))
    t = jax.lax.conv_general_dilated(t, w2, (1, 1), 'SAME',
                                     dimension_numbers=dn)
    t = jax.nn.relu(bn(t, g2, b2))
    t = jax.lax.conv_general_dilated(t, w3.reshape(1, 1, *w3.shape),
                                     (1, 1), 'VALID', dimension_numbers=dn)
    t = bn(t, g3, b3)
    out = jax.nn.relu(t + x)
    return jnp.transpose(out, (0, 3, 1, 2))


if __name__ == "__main__":
    key = jax.random.PRNGKey(0)
    # Module hyper-params: planes=8, base_width=64, groups=1 => width=8,
    # expansion=4 => out channels = 32; downsample=None => inplanes = 32.
    N, H, W = 2, 16, 16
    planes = 8
    width = planes
    inplanes = planes * 4
    Cout = planes * 4

    ks = jax.random.split(key, 10)
    x = jax.random.normal(ks[0], (N, inplanes, H, W), jnp.float32)  # NCHW

    # conv weights (PyTorch OIHW re-laid as matmul-friendly (in, out) / HWIO).
    w1 = 0.1 * jax.random.normal(ks[1], (inplanes, width), jnp.float32)
    w2 = 0.1 * jax.random.normal(ks[2], (3, 3, width, width), jnp.float32)
    w3 = 0.1 * jax.random.normal(ks[3], (width, Cout), jnp.float32)
    # BatchNorm affine params (gamma, beta), shaped (1, C).
    g1 = 1.0 + 0.05 * jax.random.normal(ks[4], (1, width), jnp.float32)
    b1 = 0.05 * jax.random.normal(ks[5], (1, width), jnp.float32)
    g2 = 1.0 + 0.05 * jax.random.normal(ks[6], (1, width), jnp.float32)
    b2 = 0.05 * jax.random.normal(ks[7], (1, width), jnp.float32)
    g3 = 1.0 + 0.05 * jax.random.normal(ks[8], (1, Cout), jnp.float32)
    b3 = 0.05 * jax.random.normal(ks[9], (1, Cout), jnp.float32)

    params = (w1, g1, b1, w2, g2, b2, w3, g3, b3)

    # One-time weight prep (hoisted out of the hot path) + jitted forward.
    prepped = prepare_params(params, W)
    fwd = jax.jit(bottleneck_forward)

    out = jax.block_until_ready(fwd(x, prepped))
    ref = jax.block_until_ready(reference_forward(x, params))

    assert out.shape == (N, Cout, H, W)
    err = float(jnp.max(jnp.abs(out - ref)))
    # bf16 matmul operands (f32 accumulate): bf16-appropriate tolerance.
    assert jnp.allclose(out, ref, atol=5e-2, rtol=5e-2), err
    print("KERNEL_OK")
</pallas_src>

<mosaic_0001>
module attributes {stable_mosaic.version = 11 : i64} {
  func.func @kernel(%arg0: i32, %arg1: memref<32x512xf32, #tpu.memory_space<vmem>>, %arg2: memref<512x128xbf16, #tpu.memory_space<vmem>>, %arg3: memref<384x128xbf16, #tpu.memory_space<vmem>>, %arg4: memref<128x512xbf16, #tpu.memory_space<vmem>>, %arg5: memref<1x8xf32, #tpu.memory_space<vmem>>, %arg6: memref<1x8xf32, #tpu.memory_space<vmem>>, %arg7: memref<1x8xf32, #tpu.memory_space<vmem>>, %arg8: memref<1x8xf32, #tpu.memory_space<vmem>>, %arg9: memref<1x32xf32, #tpu.memory_space<vmem>>, %arg10: memref<1x32xf32, #tpu.memory_space<vmem>>, %arg11: memref<128x8xf32, #tpu.memory_space<vmem>>, %arg12: memref<8x128xf32, #tpu.memory_space<vmem>>, %arg13: memref<512x32xf32, #tpu.memory_space<vmem>>, %arg14: memref<32x512xf32, #tpu.memory_space<vmem>>, %arg15: memref<32x512xf32, #tpu.memory_space<vmem>>) attributes {dimension_semantics = [#tpu.dimension_semantics<arbitrary>], iteration_bounds = array<i64: 1>, scalar_prefetch = 0 : i64, scratch_operands = 0 : i64, tpu.core_type = #tpu.core_type<tc>, window_params = [{pipeline_mode = #tpu.pipeline_mode<synchronous>, transform_indices = @transform_0, window_bounds = array<i64: 32, 512>}, {pipeline_mode = #tpu.pipeline_mode<synchronous>, transform_indices = @transform_1, window_bounds = array<i64: 512, 128>}, {pipeline_mode = #tpu.pipeline_mode<synchronous>, transform_indices = @transform_2, window_bounds = array<i64: 384, 128>}, {pipeline_mode = #tpu.pipeline_mode<synchronous>, transform_indices = @transform_3, window_bounds = array<i64: 128, 512>}, {pipeline_mode = #tpu.pipeline_mode<synchronous>, transform_indices = @transform_4, window_bounds = array<i64: 1, 8>}, {pipeline_mode = #tpu.pipeline_mode<synchronous>, transform_indices = @transform_5, window_bounds = array<i64: 1, 8>}, {pipeline_mode = #tpu.pipeline_mode<synchronous>, transform_indices = @transform_6, window_bounds = array<i64: 1, 8>}, {pipeline_mode = #tpu.pipeline_mode<synchronous>, transform_indices = @transform_7, window_bounds = array<i64: 1, 8>}, {pipeline_mode = #tpu.pipeline_mode<synchronous>, transform_indices = @transform_8, window_bounds = array<i64: 1, 32>}, {pipeline_mode = #tpu.pipeline_mode<synchronous>, transform_indices = @transform_9, window_bounds = array<i64: 1, 32>}, {pipeline_mode = #tpu.pipeline_mode<synchronous>, transform_indices = @transform_10, window_bounds = array<i64: 128, 8>}, {pipeline_mode = #tpu.pipeline_mode<synchronous>, transform_indices = @transform_11, window_bounds = array<i64: 8, 128>}, {pipeline_mode = #tpu.pipeline_mode<synchronous>, transform_indices = @transform_12, window_bounds = array<i64: 512, 32>}, {pipeline_mode = #tpu.pipeline_mode<synchronous>, transform_indices = @transform_13, window_bounds = array<i64: 32, 512>}, {pipeline_mode = #tpu.pipeline_mode<synchronous>, transform_indices = @transform_14, window_bounds = array<i64: 32, 512>}]} {
    %c0 = arith.constant 0 : index
    %c0_0 = arith.constant 0 : index
    %0 = vector.load %arg1[%c0, %c0_0] : memref<32x512xf32, #tpu.memory_space<vmem>>, vector<32x512xf32>
    %1 = arith.truncf %0 : vector<32x512xf32> to vector<32x512xbf16>
    %c0_1 = arith.constant 0 : index
    %c0_2 = arith.constant 0 : index
    %2 = vector.load %arg2[%c0_1, %c0_2] : memref<512x128xbf16, #tpu.memory_space<vmem>>, vector<512x128xbf16>
    %cst = arith.constant dense<0.000000e+00> : vector<32x128xf32>
    %3 = tpu.matmul %1, %2, %cst {dimension_numbers = #tpu.dot_dimension_numbers<[1], [0], [0], [1], [0, 0, 1, 1], [], []>} : vector<32x512xbf16>, vector<512x128xbf16>, vector<32x128xf32> -> vector<32x128xf32>
    %c0_3 = arith.constant 0 : index
    %c0_4 = arith.constant 0 : index
    %4 = vector.load %arg5[%c0_3, %c0_4] : memref<1x8xf32, #tpu.memory_space<vmem>>, vector<1x8xf32>
    %c0_5 = arith.constant 0 : index
    %c0_6 = arith.constant 0 : index
    %5 = vector.load %arg6[%c0_5, %c0_6] : memref<1x8xf32, #tpu.memory_space<vmem>>, vector<1x8xf32>
    %c0_7 = arith.constant 0 : index
    %c0_8 = arith.constant 0 : index
    %6 = vector.load %arg11[%c0_7, %c0_8] : memref<128x8xf32, #tpu.memory_space<vmem>>, vector<128x8xf32>
    %c0_9 = arith.constant 0 : index
    %c0_10 = arith.constant 0 : index
    %7 = vector.load %arg12[%c0_9, %c0_10] : memref<8x128xf32, #tpu.memory_space<vmem>>, vector<8x128xf32>
    %cst_11 = arith.constant dense<0.000000e+00> : vector<128xf32>
    %8 = vector.multi_reduction <add>, %3, %cst_11 [0] : vector<32x128xf32> to vector<128xf32>
    %9 = vector.shape_cast %8 : vector<128xf32> to vector<1x128xf32>
    %10 = arith.mulf %3, %3 : vector<32x128xf32>
    %cst_12 = arith.constant dense<0.000000e+00> : vector<128xf32>
    %11 = vector.multi_reduction <add>, %10, %cst_12 [0] : vector<32x128xf32> to vector<128xf32>
    %12 = vector.shape_cast %11 : vector<128xf32> to vector<1x128xf32>
    %13 = tpu.concatenate %9, %12 in 0 : vector<1x128xf32>, vector<1x128xf32> -> vector<2x128xf32>
    %cst_13 = arith.constant dense<0.000000e+00> : vector<2x8xf32>
    %14 = tpu.matmul %13, %6, %cst_13 {dimension_numbers = #tpu.dot_dimension_numbers<[1], [0], [0], [1], [0, 0, 1, 1], [], []>} : vector<2x128xf32>, vector<128x8xf32>, vector<2x8xf32> -> vector<2x8xf32>
    %15 = vector.extract_strided_slice %14 {offsets = [0, 0], sizes = [1, 8], strides = [1, 1]} : vector<2x8xf32> to vector<1x8xf32>
    %cst_14 = arith.constant 0.001953125 : f32
    %16 = vector.broadcast %cst_14 : f32 to vector<1x8xf32>
    %17 = arith.mulf %15, %16 : vector<1x8xf32>
    %18 = vector.extract_strided_slice %14 {offsets = [1, 0], sizes = [1, 8], strides = [1, 1]} : vector<2x8xf32> to vector<1x8xf32>
    %cst_15 = arith.constant 0.001953125 : f32
    %19 = vector.broadcast %cst_15 : f32 to vector<1x8xf32>
    %20 = arith.mulf %18, %19 : vector<1x8xf32>
    %21 = arith.mulf %17, %17 : vector<1x8xf32>
    %22 = arith.subf %20, %21 : vector<1x8xf32>
    %cst_16 = arith.constant 9.99999974E-6 : f32
    %23 = vector.broadcast %cst_16 : f32 to vector<1x8xf32>
    %24 = arith.addf %22, %23 : vector<1x8xf32>
    %25 = math.rsqrt %24 : vector<1x8xf32>
    %26 = arith.mulf %4, %25 : vector<1x8xf32>
    %27 = arith.mulf %17, %26 : vector<1x8xf32>
    %28 = arith.subf %5, %27 : vector<1x8xf32>
    %29 = tpu.concatenate %26, %28 in 0 : vector<1x8xf32>, vector<1x8xf32> -> vector<2x8xf32>
    %cst_17 = arith.constant dense<0.000000e+00> : vector<2x128xf32>
    %30 = tpu.matmul %29, %7, %cst_17 {dimension_numbers = #tpu.dot_dimension_numbers<[1], [0], [0], [1], [0, 0, 1, 1], [], []>} : vector<2x8xf32>, vector<8x128xf32>, vector<2x128xf32> -> vector<2x128xf32>
    %31 = vector.extract_strided_slice %30 {offsets = [0, 0], sizes = [1, 128], strides = [1, 1]} : vector<2x128xf32> to vector<1x128xf32>
    %32 = vector.broadcast %31 : vector<1x128xf32> to vector<32x128xf32>
    %33 = arith.mulf %3, %32 : vector<32x128xf32>
    %34 = vector.extract_strided_slice %30 {offsets = [1, 0], sizes = [1, 128], strides = [1, 1]} : vector<2x128xf32> to vector<1x128xf32>
    %35 = vector.broadcast %34 : vector<1x128xf32> to vector<32x128xf32>
    %36 = arith.addf %33, %35 : vector<32x128xf32>
    %cst_18 = arith.constant 0.000000e+00 : f32
    %37 = vector.broadcast %cst_18 : f32 to vector<32x128xf32>
    %38 = arith.maximumf %36, %37 : vector<32x128xf32>
    %39 = tpu.iota {dimensions = array<i32: 1>} : vector<2x16x128xi32>
    %40 = vector.shape_cast %39 : vector<2x16x128xi32> to vector<32x128xi32>
    %c0_i32 = arith.constant 0 : i32
    %41 = vector.broadcast %c0_i32 : i32 to vector<32x128xi32>
    %42 = arith.cmpi eq, %40, %41 : vector<32x128xi32>
    %c1_i32 = arith.constant 1 : i32
    %43 = tpu.dynamic_rotate %38 by %c1_i32 dim 0 : vector<32x128xf32>, i32 -> vector<32x128xf32>
    %cst_19 = arith.constant 0.000000e+00 : f32
    %44 = vector.broadcast %cst_19 : f32 to vector<32x128xf32>
    %45 = arith.select %42, %44, %43 : vector<32x128xi1>, vector<32x128xf32>
    %c15_i32 = arith.constant 15 : i32
    %46 = vector.broadcast %c15_i32 : i32 to vector<32x128xi32>
    %47 = arith.cmpi eq, %40, %46 : vector<32x128xi32>
    %c31_i32 = arith.constant 31 : i32
    %48 = tpu.dynamic_rotate %38 by %c31_i32 dim 0 : vector<32x128xf32>, i32 -> vector<32x128xf32>
    %cst_20 = arith.constant 0.000000e+00 : f32
    %49 = vector.broadcast %cst_20 : f32 to vector<32x128xf32>
    %50 = arith.select %47, %49, %48 : vector<32x128xi1>, vector<32x128xf32>
    %51 = tpu.concatenate %45, %38, %50 in 1 : vector<32x128xf32>, vector<32x128xf32>, vector<32x128xf32> -> vector<32x384xf32>
    %52 = arith.truncf %51 : vector<32x384xf32> to vector<32x384xbf16>
    %c0_21 = arith.constant 0 : index
    %c0_22 = arith.constant 0 : index
    %53 = vector.load %arg3[%c0_21, %c0_22] : memref<384x128xbf16, #tpu.memory_space<vmem>>, vector<384x128xbf16>
    %cst_23 = arith.constant dense<0.000000e+00> : vector<32x128xf32>
    %54 = tpu.matmul %52, %53, %cst_23 {dimension_numbers = #tpu.dot_dimension_numbers<[1], [0], [0], [1], [0, 0, 1, 1], [], []>} : vector<32x384xbf16>, vector<384x128xbf16>, vector<32x128xf32> -> vector<32x128xf32>
    %c0_24 = arith.constant 0 : index
    %c0_25 = arith.constant 0 : index
    %55 = vector.load %arg7[%c0_24, %c0_25] : memref<1x8xf32, #tpu.memory_space<vmem>>, vector<1x8xf32>
    %c0_26 = arith.constant 0 : index
    %c0_27 = arith.constant 0 : index
    %56 = vector.load %arg8[%c0_26, %c0_27] : memref<1x8xf32, #tpu.memory_space<vmem>>, vector<1x8xf32>
    %c0_28 = arith.constant 0 : index
    %c0_29 = arith.constant 0 : index
    %57 = vector.load %arg11[%c0_28, %c0_29] : memref<128x8xf32, #tpu.memory_space<vmem>>, vector<128x8xf32>
    %c0_30 = arith.constant 0 : index
    %c0_31 = arith.constant 0 : index
    %58 = vector.load %arg12[%c0_30, %c0_31] : memref<8x128xf32, #tpu.memory_space<vmem>>, vector<8x128xf32>
    %cst_32 = arith.constant dense<0.000000e+00> : vector<128xf32>
    %59 = vector.multi_reduction <add>, %54, %cst_32 [0] : vector<32x128xf32> to vector<128xf32>
    %60 = vector.shape_cast %59 : vector<128xf32> to vector<1x128xf32>
    %61 = arith.mulf %54, %54 : vector<32x128xf32>
    %cst_33 = arith.constant dense<0.000000e+00> : vector<128xf32>
    %62 = vector.multi_reduction <add>, %61, %cst_33 [0] : vector<32x128xf32> to vector<128xf32>
    %63 = vector.shape_cast %62 : vector<128xf32> to vector<1x128xf32>
    %64 = tpu.concatenate %60, %63 in 0 : vector<1x128xf32>, vector<1x128xf32> -> vector<2x128xf32>
    %cst_34 = arith.constant dense<0.000000e+00> : vector<2x8xf32>
    %65 = tpu.matmul %64, %57, %cst_34 {dimension_numbers = #tpu.dot_dimension_numbers<[1], [0], [0], [1], [0, 0, 1, 1], [], []>} : vector<2x128xf32>, vector<128x8xf32>, vector<2x8xf32> -> vector<2x8xf32>
    %66 = vector.extract_strided_slice %65 {offsets = [0, 0], sizes = [1, 8], strides = [1, 1]} : vector<2x8xf32> to vector<1x8xf32>
    %cst_35 = arith.constant 0.001953125 : f32
    %67 = vector.broadcast %cst_35 : f32 to vector<1x8xf32>
    %68 = arith.mulf %66, %67 : vector<1x8xf32>
    %69 = vector.extract_strided_slice %65 {offsets = [1, 0], sizes = [1, 8], strides = [1, 1]} : vector<2x8xf32> to vector<1x8xf32>
    %cst_36 = arith.constant 0.001953125 : f32
    %70 = vector.broadcast %cst_36 : f32 to vector<1x8xf32>
    %71 = arith.mulf %69, %70 : vector<1x8xf32>
    %72 = arith.mulf %68, %68 : vector<1x8xf32>
    %73 = arith.subf %71, %72 : vector<1x8xf32>
    %cst_37 = arith.constant 9.99999974E-6 : f32
    %74 = vector.broadcast %cst_37 : f32 to vector<1x8xf32>
    %75 = arith.addf %73, %74 : vector<1x8xf32>
    %76 = math.rsqrt %75 : vector<1x8xf32>
    %77 = arith.mulf %55, %76 : vector<1x8xf32>
    %78 = arith.mulf %68, %77 : vector<1x8xf32>
    %79 = arith.subf %56, %78 : vector<1x8xf32>
    %80 = tpu.concatenate %77, %79 in 0 : vector<1x8xf32>, vector<1x8xf32> -> vector<2x8xf32>
    %cst_38 = arith.constant dense<0.000000e+00> : vector<2x128xf32>
    %81 = tpu.matmul %80, %58, %cst_38 {dimension_numbers = #tpu.dot_dimension_numbers<[1], [0], [0], [1], [0, 0, 1, 1], [], []>} : vector<2x8xf32>, vector<8x128xf32>, vector<2x128xf32> -> vector<2x128xf32>
    %82 = vector.extract_strided_slice %81 {offsets = [0, 0], sizes = [1, 128], strides = [1, 1]} : vector<2x128xf32> to vector<1x128xf32>
    %83 = vector.broadcast %82 : vector<1x128xf32> to vector<32x128xf32>
    %84 = arith.mulf %54, %83 : vector<32x128xf32>
    %85 = vector.extract_strided_slice %81 {offsets = [1, 0], sizes = [1, 128], strides = [1, 1]} : vector<2x128xf32> to vector<1x128xf32>
    %86 = vector.broadcast %85 : vector<1x128xf32> to vector<32x128xf32>
    %87 = arith.addf %84, %86 : vector<32x128xf32>
    %cst_39 = arith.constant 0.000000e+00 : f32
    %88 = vector.broadcast %cst_39 : f32 to vector<32x128xf32>
    %89 = arith.maximumf %87, %88 : vector<32x128xf32>
    %90 = arith.truncf %89 : vector<32x128xf32> to vector<32x128xbf16>
    %c0_40 = arith.constant 0 : index
    %c0_41 = arith.constant 0 : index
    %91 = vector.load %arg4[%c0_40, %c0_41] : memref<128x512xbf16, #tpu.memory_space<vmem>>, vector<128x512xbf16>
    %cst_42 = arith.constant dense<0.000000e+00> : vector<32x512xf32>
    %92 = tpu.matmul %90, %91, %cst_42 {dimension_numbers = #tpu.dot_dimension_numbers<[1], [0], [0], [1], [0, 0, 1, 1], [], []>} : vector<32x128xbf16>, vector<128x512xbf16>, vector<32x512xf32> -> vector<32x512xf32>
    %c0_43 = arith.constant 0 : index
    %c0_44 = arith.constant 0 : index
    %93 = vector.load %arg9[%c0_43, %c0_44] : memref<1x32xf32, #tpu.memory_space<vmem>>, vector<1x32xf32>
    %c0_45 = arith.constant 0 : index
    %c0_46 = arith.constant 0 : index
    %94 = vector.load %arg10[%c0_45, %c0_46] : memref<1x32xf32, #tpu.memory_space<vmem>>, vector<1x32xf32>
    %c0_47 = arith.constant 0 : index
    %c0_48 = arith.constant 0 : index
    %95 = vector.load %arg13[%c0_47, %c0_48] : memref<512x32xf32, #tpu.memory_space<vmem>>, vector<512x32xf32>
    %c0_49 = arith.constant 0 : index
    %c0_50 = arith.constant 0 : index
    %96 = vector.load %arg14[%c0_49, %c0_50] : memref<32x512xf32, #tpu.memory_space<vmem>>, vector<32x512xf32>
    %cst_51 = arith.constant dense<0.000000e+00> : vector<512xf32>
    %97 = vector.multi_reduction <add>, %92, %cst_51 [0] : vector<32x512xf32> to vector<512xf32>
    %98 = vector.shape_cast %97 : vector<512xf32> to vector<1x512xf32>
    %99 = arith.mulf %92, %92 : vector<32x512xf32>
    %cst_52 = arith.constant dense<0.000000e+00> : vector<512xf32>
    %100 = vector.multi_reduction <add>, %99, %cst_52 [0] : vector<32x512xf32> to vector<512xf32>
    %101 = vector.shape_cast %100 : vector<512xf32> to vector<1x512xf32>
    %102 = tpu.concatenate %98, %101 in 0 : vector<1x512xf32>, vector<1x512xf32> -> vector<2x512xf32>
    %cst_53 = arith.constant dense<0.000000e+00> : vector<2x32xf32>
    %103 = tpu.matmul %102, %95, %cst_53 {dimension_numbers = #tpu.dot_dimension_numbers<[1], [0], [0], [1], [0, 0, 1, 1], [], []>} : vector<2x512xf32>, vector<512x32xf32>, vector<2x32xf32> -> vector<2x32xf32>
    %104 = vector.extract_strided_slice %103 {offsets = [0, 0], sizes = [1, 32], strides = [1, 1]} : vector<2x32xf32> to vector<1x32xf32>
    %cst_54 = arith.constant 0.001953125 : f32
    %105 = vector.broadcast %cst_54 : f32 to vector<1x32xf32>
    %106 = arith.mulf %104, %105 : vector<1x32xf32>
    %107 = vector.extract_strided_slice %103 {offsets = [1, 0], sizes = [1, 32], strides = [1, 1]} : vector<2x32xf32> to vector<1x32xf32>
    %cst_55 = arith.constant 0.001953125 : f32
    %108 = vector.broadcast %cst_55 : f32 to vector<1x32xf32>
    %109 = arith.mulf %107, %108 : vector<1x32xf32>
    %110 = arith.mulf %106, %106 : vector<1x32xf32>
    %111 = arith.subf %109, %110 : vector<1x32xf32>
    %cst_56 = arith.constant 9.99999974E-6 : f32
    %112 = vector.broadcast %cst_56 : f32 to vector<1x32xf32>
    %113 = arith.addf %111, %112 : vector<1x32xf32>
    %114 = math.rsqrt %113 : vector<1x32xf32>
    %115 = arith.mulf %93, %114 : vector<1x32xf32>
    %116 = arith.mulf %106, %115 : vector<1x32xf32>
    %117 = arith.subf %94, %116 : vector<1x32xf32>
    %118 = tpu.concatenate %115, %117 in 0 : vector<1x32xf32>, vector<1x32xf32> -> vector<2x32xf32>
    %cst_57 = arith.constant dense<0.000000e+00> : vector<2x512xf32>
    %119 = tpu.matmul %118, %96, %cst_57 {dimension_numbers = #tpu.dot_dimension_numbers<[1], [0], [0], [1], [0, 0, 1, 1], [], []>} : vector<2x32xf32>, vector<32x512xf32>, vector<2x512xf32> -> vector<2x512xf32>
    %120 = vector.extract_strided_slice %119 {offsets = [0, 0], sizes = [1, 512], strides = [1, 1]} : vector<2x512xf32> to vector<1x512xf32>
    %121 = vector.broadcast %120 : vector<1x512xf32> to vector<32x512xf32>
    %122 = arith.mulf %92, %121 : vector<32x512xf32>
    %123 = vector.extract_strided_slice %119 {offsets = [1, 0], sizes = [1, 512], strides = [1, 1]} : vector<2x512xf32> to vector<1x512xf32>
    %124 = vector.broadcast %123 : vector<1x512xf32> to vector<32x512xf32>
    %125 = arith.addf %122, %124 : vector<32x512xf32>
    %126 = arith.addf %125, %0 : vector<32x512xf32>
    %cst_58 = arith.constant 0.000000e+00 : f32
    %127 = vector.broadcast %cst_58 : f32 to vector<32x512xf32>
    %128 = arith.maximumf %126, %127 : vector<32x512xf32>
    %c0_59 = arith.constant 0 : index
    %c0_60 = arith.constant 0 : index
    %129 = vector.load %arg15[%c0_59, %c0_60] : memref<32x512xf32, #tpu.memory_space<vmem>>, vector<32x512xf32>
    tpu.vector_store %arg15[%c0_59, %c0_60], %128 {strides = array<i32>} : memref<32x512xf32, #tpu.memory_space<vmem>>, vector<32x512xf32>,
    return
  }
  func.func @transform_0(%arg0: i32) -> (i32, i32) {
    %c0_i32 = arith.constant 0 : i32
    %c0_i32_0 = arith.constant 0 : i32
    %c0_i32_1 = arith.constant 0 : i32
    return %c0_i32, %c0_i32_0 : i32, i32
  }
  func.func @transform_1(%arg0: i32) -> (i32, i32) {
    %c0_i32 = arith.constant 0 : i32
    %c0_i32_0 = arith.constant 0 : i32
    %c0_i32_1 = arith.constant 0 : i32
    return %c0_i32, %c0_i32_0 : i32, i32
  }
  func.func @transform_2(%arg0: i32) -> (i32, i32) {
    %c0_i32 = arith.constant 0 : i32
    %c0_i32_0 = arith.constant 0 : i32
    %c0_i32_1 = arith.constant 0 : i32
    return %c0_i32, %c0_i32_0 : i32, i32
  }
  func.func @transform_3(%arg0: i32) -> (i32, i32) {
    %c0_i32 = arith.constant 0 : i32
    %c0_i32_0 = arith.constant 0 : i32
    %c0_i32_1 = arith.constant 0 : i32
    return %c0_i32, %c0_i32_0 : i32, i32
  }
  func.func @transform_4(%arg0: i32) -> (i32, i32) {
    %c0_i32 = arith.constant 0 : i32
    %c0_i32_0 = arith.constant 0 : i32
    %c0_i32_1 = arith.constant 0 : i32
    return %c0_i32, %c0_i32_0 : i32, i32
  }
  func.func @transform_5(%arg0: i32) -> (i32, i32) {
    %c0_i32 = arith.constant 0 : i32
    %c0_i32_0 = arith.constant 0 : i32
    %c0_i32_1 = arith.constant 0 : i32
    return %c0_i32, %c0_i32_0 : i32, i32
  }
  func.func @transform_6(%arg0: i32) -> (i32, i32) {
    %c0_i32 = arith.constant 0 : i32
    %c0_i32_0 = arith.constant 0 : i32
    %c0_i32_1 = arith.constant 0 : i32
    return %c0_i32, %c0_i32_0 : i32, i32
  }
  func.func @transform_7(%arg0: i32) -> (i32, i32) {
    %c0_i32 = arith.constant 0 : i32
    %c0_i32_0 = arith.constant 0 : i32
    %c0_i32_1 = arith.constant 0 : i32
    return %c0_i32, %c0_i32_0 : i32, i32
  }
  func.func @transform_8(%arg0: i32) -> (i32, i32) {
    %c0_i32 = arith.constant 0 : i32
    %c0_i32_0 = arith.constant 0 : i32
    %c0_i32_1 = arith.constant 0 : i32
    return %c0_i32, %c0_i32_0 : i32, i32
  }
  func.func @transform_9(%arg0: i32) -> (i32, i32) {
    %c0_i32 = arith.constant 0 : i32
    %c0_i32_0 = arith.constant 0 : i32
    %c0_i32_1 = arith.constant 0 : i32
    return %c0_i32, %c0_i32_0 : i32, i32
  }
  func.func @transform_10(%arg0: i32) -> (i32, i32) {
    %c0_i32 = arith.constant 0 : i32
    %c0_i32_0 = arith.constant 0 : i32
    %c0_i32_1 = arith.constant 0 : i32
    return %c0_i32, %c0_i32_0 : i32, i32
  }
  func.func @transform_11(%arg0: i32) -> (i32, i32) {
    %c0_i32 = arith.constant 0 : i32
    %c0_i32_0 = arith.constant 0 : i32
    %c0_i32_1 = arith.constant 0 : i32
    return %c0_i32, %c0_i32_0 : i32, i32
  }
  func.func @transform_12(%arg0: i32) -> (i32, i32) {
    %c0_i32 = arith.constant 0 : i32
    %c0_i32_0 = arith.constant 0 : i32
    %c0_i32_1 = arith.constant 0 : i32
    return %c0_i32, %c0_i32_0 : i32, i32
  }
  func.func @transform_13(%arg0: i32) -> (i32, i32) {
    %c0_i32 = arith.constant 0 : i32
    %c0_i32_0 = arith.constant 0 : i32
    %c0_i32_1 = arith.constant 0 : i32
    return %c0_i32, %c0_i32_0 : i32, i32
  }
  func.func @transform_14(%arg0: i32) -> (i32, i32) {
    %c0_i32 = arith.constant 0 : i32
    %c0_i32_0 = arith.constant 0 : i32
    %c0_i32_1 = arith.constant 0 : i32
    return %c0_i32, %c0_i32_0 : i32, i32
  }
}

</mosaic_0001>

<llo_original>
// kernel: bottleneck_forward.1
$region0: #{bottleneck_forward.1}
  #allocation0 [shape = 'u32[]', space=smem, size = 0x4, offset = 0x4, fixed_abs, tag = 'smem constant byte address 0x4 - core index']
  #allocation1 [shape = 'u32[144,128]{1,0:T(1,128)}', space=vmem, size = 0x12000, scoped, tag = 'internal scratch']
  %s0 = inlined_call_operand.vmem [shape: f32[32,512], index: 0, kind: input, shape index: {}]
  %s1 = inlined_call_operand.vmem [shape: bf16[512,128], index: 1, kind: input, shape index: {}]
  %s2 = inlined_call_operand.vmem [shape: bf16[384,128], index: 2, kind: input, shape index: {}]
  %s3 = inlined_call_operand.vmem [shape: bf16[128,512], index: 3, kind: input, shape index: {}]
  %s4 = inlined_call_operand.vmem [shape: f32[1,8], index: 4, kind: input, shape index: {}]
  %s5 = inlined_call_operand.vmem [shape: f32[1,8], index: 5, kind: input, shape index: {}]
  %s6 = inlined_call_operand.vmem [shape: f32[1,8], index: 6, kind: input, shape index: {}]
  %s7 = inlined_call_operand.vmem [shape: f32[1,8], index: 7, kind: input, shape index: {}]
  %s8 = inlined_call_operand.vmem [shape: f32[1,32], index: 8, kind: input, shape index: {}]
  %s9 = inlined_call_operand.vmem [shape: f32[1,32], index: 9, kind: input, shape index: {}]
  %s10 = inlined_call_operand.vmem [shape: f32[128,8], index: 10, kind: input, shape index: {}]
  %s11 = inlined_call_operand.vmem [shape: f32[8,128], index: 11, kind: input, shape index: {}]
  %s12 = inlined_call_operand.vmem [shape: f32[512,32], index: 12, kind: input, shape index: {}]
  %s13 = inlined_call_operand.vmem [shape: f32[32,512], index: 13, kind: input, shape index: {}]
  %s14 = inlined_call_operand.vmem [shape: f32[32,512], index: 14, kind: output, shape index: {}]
  %s15 = sld [smem:[#allocation0]]
  $region66: #{bottleneck_forward.1} parent=0
    _
  %s17 = ssub.s32 1, %s15
  %s18 = scalar_select 0, %s17, %s15
  // Predicated region
  $region2: #{bottleneck_forward.1} parent=0 // pred_check
    _
  $region3: #{bottleneck_forward.1} parent=0 // pred_check_branch
    %20 = sbr.rel (0) target = $region5
  $region4: #{bottleneck_forward.1} parent=0 // pred_region
    _
  $region5: #{bottleneck_forward.1} parent=0 // pred_fallthru
    _
  // Predicated region
  $region6: #{bottleneck_forward.1} parent=0 // pred_check
    _
  $region7: #{bottleneck_forward.1} parent=0 // pred_check_branch
    %22 = sbr.rel (0) target = $region9
  $region8: #{bottleneck_forward.1} parent=0 // pred_region
    _
  $region9: #{bottleneck_forward.1} parent=0 // pred_fallthru
    _
  // Predicated region
  $region10: #{bottleneck_forward.1} parent=0 // pred_check
    _
  $region11: #{bottleneck_forward.1} parent=0 // pred_check_branch
    %24 = sbr.rel (0) target = $region13
  $region12: #{bottleneck_forward.1} parent=0 // pred_region
    _
  $region13: #{bottleneck_forward.1} parent=0 // pred_fallthru
    _
  // Predicated region
  $region14: #{bottleneck_forward.1} parent=0 // pred_check
    _
  $region15: #{bottleneck_forward.1} parent=0 // pred_check_branch
    %26 = sbr.rel (0) target = $region17
  $region16: #{bottleneck_forward.1} parent=0 // pred_region
    _
  $region17: #{bottleneck_forward.1} parent=0 // pred_fallthru
    _
  // Predicated region
  $region18: #{bottleneck_forward.1} parent=0 // pred_check
    _
  $region19: #{bottleneck_forward.1} parent=0 // pred_check_branch
    %28 = sbr.rel (0) target = $region21
  $region20: #{bottleneck_forward.1} parent=0 // pred_region
    _
  $region21: #{bottleneck_forward.1} parent=0 // pred_fallthru
    _
  // Predicated region
  $region22: #{bottleneck_forward.1} parent=0 // pred_check
    _
  $region23: #{bottleneck_forward.1} parent=0 // pred_check_branch
    %30 = sbr.rel (0) target = $region25
  $region24: #{bottleneck_forward.1} parent=0 // pred_region
    _
  $region25: #{bottleneck_forward.1} parent=0 // pred_fallthru
    _
  // Predicated region
  $region26: #{bottleneck_forward.1} parent=0 // pred_check
    _
  $region27: #{bottleneck_forward.1} parent=0 // pred_check_branch
    %32 = sbr.rel (0) target = $region29
  $region28: #{bottleneck_forward.1} parent=0 // pred_region
    _
  $region29: #{bottleneck_forward.1} parent=0 // pred_fallthru
    _
  // Predicated region
  $region30: #{bottleneck_forward.1} parent=0 // pred_check
    _
  $region31: #{bottleneck_forward.1} parent=0 // pred_check_branch
    %34 = sbr.rel (0) target = $region33
  $region32: #{bottleneck_forward.1} parent=0 // pred_region
    _
  $region33: #{bottleneck_forward.1} parent=0 // pred_fallthru
    _
  // Predicated region
  $region34: #{bottleneck_forward.1} parent=0 // pred_check
    _
  $region35: #{bottleneck_forward.1} parent=0 // pred_check_branch
    %36 = sbr.rel (0) target = $region37
  $region36: #{bottleneck_forward.1} parent=0 // pred_region
    _
  $region37: #{bottleneck_forward.1} parent=0 // pred_fallthru
    _
  // Predicated region
  $region38: #{bottleneck_forward.1} parent=0 // pred_check
    _
  $region39: #{bottleneck_forward.1} parent=0 // pred_check_branch
    %38 = sbr.rel (0) target = $region41
  $region40: #{bottleneck_forward.1} parent=0 // pred_region
    _
  $region41: #{bottleneck_forward.1} parent=0 // pred_fallthru
    _
  // Predicated region
  $region42: #{bottleneck_forward.1} parent=0 // pred_check
    _
  $region43: #{bottleneck_forward.1} parent=0 // pred_check_branch
    %40 = sbr.rel (0) target = $region45
  $region44: #{bottleneck_forward.1} parent=0 // pred_region
    _
  $region45: #{bottleneck_forward.1} parent=0 // pred_fallthru
    _
  // Predicated region
  $region46: #{bottleneck_forward.1} parent=0 // pred_check
    _
  $region47: #{bottleneck_forward.1} parent=0 // pred_check_branch
    %42 = sbr.rel (0) target = $region49
  $region48: #{bottleneck_forward.1} parent=0 // pred_region
    _
  $region49: #{bottleneck_forward.1} parent=0 // pred_fallthru
    _
  // Predicated region
  $region50: #{bottleneck_forward.1} parent=0 // pred_check
    _
  $region51: #{bottleneck_forward.1} parent=0 // pred_check_branch
    %44 = sbr.rel (0) target = $region53
  $region52: #{bottleneck_forward.1} parent=0 // pred_region
    _
  $region53: #{bottleneck_forward.1} parent=0 // pred_fallthru
    _
  // Predicated region
  $region54: #{bottleneck_forward.1} parent=0 // pred_check
    _
  $region55: #{bottleneck_forward.1} parent=0 // pred_check_branch
    %46 = sbr.rel (0) target = $region57
  $region56: #{bottleneck_forward.1} parent=0 // pred_region
    _
  $region57: #{bottleneck_forward.1} parent=0 // pred_fallthru
    _
  %v48 = vld [vmem:[%s0] sm:$0xff]
  %v49 = vld [vmem:[%s0 + $0x8] sm:$0xff]
  %v50 = vld [vmem:[%s0 + $0x10] sm:$0xff]
  %v51 = vld [vmem:[%s0 + $0x18] sm:$0xff]
  %v52 = vld [vmem:[%s0 + $0x20] sm:$0xff]
  %v53 = vld [vmem:[%s0 + $0x28] sm:$0xff]
  %v54 = vld [vmem:[%s0 + $0x30] sm:$0xff]
  %v55 = vld [vmem:[%s0 + $0x38] sm:$0xff]
  %v56 = vld [vmem:[%s0 + $0x40] sm:$0xff]
  %v57 = vld [vmem:[%s0 + $0x48] sm:$0xff]
  %v58 = vld [vmem:[%s0 + $0x50] sm:$0xff]
  %v59 = vld [vmem:[%s0 + $0x58] sm:$0xff]
  %v60 = vld [vmem:[%s0 + $0x60] sm:$0xff]
  %v61 = vld [vmem:[%s0 + $0x68] sm:$0xff]
  %v62 = vld [vmem:[%s0 + $0x70] sm:$0xff]
  %v63 = vld [vmem:[%s0 + $0x78] sm:$0xff]
  %v64 = vpack.c.bf16 %v52, %v48
  %v65 = vpack.c.bf16 %v53, %v49
  %v66 = vpack.c.bf16 %v54, %v50
  %v67 = vpack.c.bf16 %v55, %v51
  %v68 = vpack.c.bf16 %v60, %v56
  %v69 = vpack.c.bf16 %v61, %v57
  %v70 = vpack.c.bf16 %v62, %v58
  %v71 = vpack.c.bf16 %v63, %v59
  %v72 = vld [vmem:[%s1] sm:$0xf]
  %v73 = vld [vmem:[%s1 + $0x4] sm:$0xf]
  %v74 = vld [vmem:[%s1 + $0x8] sm:$0xf]
  %v75 = vld [vmem:[%s1 + $0xc] sm:$0xf]
  %v76 = vld [vmem:[%s1 + $0x10] sm:$0xf]
  %v77 = vld [vmem:[%s1 + $0x14] sm:$0xf]
  %v78 = vld [vmem:[%s1 + $0x18] sm:$0xf]
  %v79 = vld [vmem:[%s1 + $0x1c] sm:$0xf]
  %v80 = vld [vmem:[%s1 + $0x20] sm:$0xf]
  %v81 = vld [vmem:[%s1 + $0x24] sm:$0xf]
  %v82 = vld [vmem:[%s1 + $0x28] sm:$0xf]
  %v83 = vld [vmem:[%s1 + $0x2c] sm:$0xf]
  %v84 = vld [vmem:[%s1 + $0x30] sm:$0xf]
  %v85 = vld [vmem:[%s1 + $0x34] sm:$0xf]
  %v86 = vld [vmem:[%s1 + $0x38] sm:$0xf]
  %v87 = vld [vmem:[%s1 + $0x3c] sm:$0xf]
  %v88 = vld [vmem:[%s1 + $0x40] sm:$0xf]
  %v89 = vld [vmem:[%s1 + $0x44] sm:$0xf]
  %v90 = vld [vmem:[%s1 + $0x48] sm:$0xf]
  %v91 = vld [vmem:[%s1 + $0x4c] sm:$0xf]
  %v92 = vld [vmem:[%s1 + $0x50] sm:$0xf]
  %v93 = vld [vmem:[%s1 + $0x54] sm:$0xf]
  %v94 = vld [vmem:[%s1 + $0x58] sm:$0xf]
  %v95 = vld [vmem:[%s1 + $0x5c] sm:$0xf]
  %v96 = vld [vmem:[%s1 + $0x60] sm:$0xf]
  %v97 = vld [vmem:[%s1 + $0x64] sm:$0xf]
  %v98 = vld [vmem:[%s1 + $0x68] sm:$0xf]
  %v99 = vld [vmem:[%s1 + $0x6c] sm:$0xf]
  %v100 = vld [vmem:[%s1 + $0x70] sm:$0xf]
  %v101 = vld [vmem:[%s1 + $0x74] sm:$0xf]
  %v102 = vld [vmem:[%s1 + $0x78] sm:$0xf]
  %v103 = vld [vmem:[%s1 + $0x7c] sm:$0xf]
  %v104 = vld [vmem:[%s1 + $0x80] sm:$0xf]
  %v105 = vld [vmem:[%s1 + $0x84] sm:$0xf]
  %v106 = vld [vmem:[%s1 + $0x88] sm:$0xf]
  %v107 = vld [vmem:[%s1 + $0x8c] sm:$0xf]
  %v108 = vld [vmem:[%s1 + $0x90] sm:$0xf]
  %v109 = vld [vmem:[%s1 + $0x94] sm:$0xf]
  %v110 = vld [vmem:[%s1 + $0x98] sm:$0xf]
  %v111 = vld [vmem:[%s1 + $0x9c] sm:$0xf]
  %v112 = vld [vmem:[%s1 + $0xa0] sm:$0xf]
  %v113 = vld [vmem:[%s1 + $0xa4] sm:$0xf]
  %v114 = vld [vmem:[%s1 + $0xa8] sm:$0xf]
  %v115 = vld [vmem:[%s1 + $0xac] sm:$0xf]
  %v116 = vld [vmem:[%s1 + $0xb0] sm:$0xf]
  %v117 = vld [vmem:[%s1 + $0xb4] sm:$0xf]
  %v118 = vld [vmem:[%s1 + $0xb8] sm:$0xf]
  %v119 = vld [vmem:[%s1 + $0xbc] sm:$0xf]
  %v120 = vld [vmem:[%s1 + $0xc0] sm:$0xf]
  %v121 = vld [vmem:[%s1 + $0xc4] sm:$0xf]
  %v122 = vld [vmem:[%s1 + $0xc8] sm:$0xf]
  %v123 = vld [vmem:[%s1 + $0xcc] sm:$0xf]
  %v124 = vld [vmem:[%s1 + $0xd0] sm:$0xf]
  %v125 = vld [vmem:[%s1 + $0xd4] sm:$0xf]
  %v126 = vld [vmem:[%s1 + $0xd8] sm:$0xf]
  %v127 = vld [vmem:[%s1 + $0xdc] sm:$0xf]
  %v128 = vld [vmem:[%s1 + $0xe0] sm:$0xf]
  %v129 = vld [vmem:[%s1 + $0xe4] sm:$0xf]
  %v130 = vld [vmem:[%s1 + $0xe8] sm:$0xf]
  %v131 = vld [vmem:[%s1 + $0xec] sm:$0xf]
  %v132 = vld [vmem:[%s1 + $0xf0] sm:$0xf]
  %v133 = vld [vmem:[%s1 + $0xf4] sm:$0xf]
  %v134 = vld [vmem:[%s1 + $0xf8] sm:$0xf]
  %v135 = vld [vmem:[%s1 + $0xfc] sm:$0xf]
  %v200 = vunpack.c.l.b16 %v72
  %v201 = vunpack.c.l.b16 %v73
  %v202 = vunpack.c.l.b16 %v74
  %v203 = vunpack.c.l.b16 %v75
  %v204 = vunpack.c.l.b16 %v76
  %v205 = vunpack.c.l.b16 %v77
  %v206 = vunpack.c.l.b16 %v78
  %v207 = vunpack.c.l.b16 %v79
  %v208 = vunpack.c.l.b16 %v80
  %v209 = vunpack.c.l.b16 %v81
  %v210 = vunpack.c.l.b16 %v82
  %v211 = vunpack.c.l.b16 %v83
  %v212 = vunpack.c.l.b16 %v84
  %v213 = vunpack.c.l.b16 %v85
  %v214 = vunpack.c.l.b16 %v86
  %v215 = vunpack.c.l.b16 %v87
  %v216 = vunpack.c.l.b16 %v88
  %v217 = vunpack.c.l.b16 %v89
  %v218 = vunpack.c.l.b16 %v90
  %v219 = vunpack.c.l.b16 %v91
  %v220 = vunpack.c.l.b16 %v92
  %v221 = vunpack.c.l.b16 %v93
  %v222 = vunpack.c.l.b16 %v94
  %v223 = vunpack.c.l.b16 %v95
  %v224 = vunpack.c.l.b16 %v96
  %v225 = vunpack.c.l.b16 %v97
  %v226 = vunpack.c.l.b16 %v98
  %v227 = vunpack.c.l.b16 %v99
  %v228 = vunpack.c.l.b16 %v100
  %v229 = vunpack.c.l.b16 %v101
  %v230 = vunpack.c.l.b16 %v102
  %v231 = vunpack.c.l.b16 %v103
  %v232 = vunpack.c.l.b16 %v104
  %v233 = vunpack.c.l.b16 %v105
  %v234 = vunpack.c.l.b16 %v106
  %v235 = vunpack.c.l.b16 %v107
  %v236 = vunpack.c.l.b16 %v108
  %v237 = vunpack.c.l.b16 %v109
  %v238 = vunpack.c.l.b16 %v110
  %v239 = vunpack.c.l.b16 %v111
  %v240 = vunpack.c.l.b16 %v112
  %v241 = vunpack.c.l.b16 %v113
  %v242 = vunpack.c.l.b16 %v114
  %v243 = vunpack.c.l.b16 %v115
  %v244 = vunpack.c.l.b16 %v116
  %v245 = vunpack.c.l.b16 %v117
  %v246 = vunpack.c.l.b16 %v118
  %v247 = vunpack.c.l.b16 %v119
  %v248 = vunpack.c.l.b16 %v120
  %v249 = vunpack.c.l.b16 %v121
  %v250 = vunpack.c.l.b16 %v122
  %v251 = vunpack.c.l.b16 %v123
  %v252 = vunpack.c.l.b16 %v124
  %v253 = vunpack.c.l.b16 %v125
  %v254 = vunpack.c.l.b16 %v126
  %v255 = vunpack.c.l.b16 %v127
  %v256 = vunpack.c.l.b16 %v128
  %v257 = vunpack.c.l.b16 %v129
  %v258 = vunpack.c.l.b16 %v130
  %v259 = vunpack.c.l.b16 %v131
  %v260 = vunpack.c.l.b16 %v132
  %v261 = vunpack.c.l.b16 %v133
  %v262 = vunpack.c.l.b16 %v134
  %v263 = vunpack.c.l.b16 %v135
  %v264 = vpack.c.b16 %v201, %v200
  %v265 = vpack.c.b16 %v203, %v202
  %v266 = vpack.c.b16 %v205, %v204
  %v267 = vpack.c.b16 %v207, %v206
  %v268 = vpack.c.b16 %v209, %v208
  %v269 = vpack.c.b16 %v211, %v210
  %v270 = vpack.c.b16 %v213, %v212
  %v271 = vpack.c.b16 %v215, %v214
  %v272 = vpack.c.b16 %v217, %v216
  %v273 = vpack.c.b16 %v219, %v218
  %v274 = vpack.c.b16 %v221, %v220
  %v275 = vpack.c.b16 %v223, %v222
  %v276 = vpack.c.b16 %v225, %v224
  %v277 = vpack.c.b16 %v227, %v226
  %v278 = vpack.c.b16 %v229, %v228
  %v279 = vpack.c.b16 %v231, %v230
  %v280 = vpack.c.b16 %v233, %v232
  %v281 = vpack.c.b16 %v235, %v234
  %v282 = vpack.c.b16 %v237, %v236
  %v283 = vpack.c.b16 %v239, %v238
  %v284 = vpack.c.b16 %v241, %v240
  %v285 = vpack.c.b16 %v243, %v242
  %v286 = vpack.c.b16 %v245, %v244
  %v287 = vpack.c.b16 %v247, %v246
  %v288 = vpack.c.b16 %v249, %v248
  %v289 = vpack.c.b16 %v251, %v250
  %v290 = vpack.c.b16 %v253, %v252
  %v291 = vpack.c.b16 %v255, %v254
  %v292 = vpack.c.b16 %v257, %v256
  %v293 = vpack.c.b16 %v259, %v258
  %v294 = vpack.c.b16 %v261, %v260
  %v295 = vpack.c.b16 %v263, %v262
  %328 = vmatprep.subr.bf16.mxu0 0
  %329 = vmatpush1.bf16.msra.mxu0 %v264
  %330 = vmatprep.subr.bf16.mxu0 0
  %331 = vmatpush1.bf16.msra.mxu0 %v265
  %332 = vmatprep.subr.bf16.mxu0 0
  %333 = vmatpush1.bf16.msra.mxu0 %v266
  %334 = vmatprep.subr.bf16.mxu0 0
  %335 = vmatpush1.bf16.msra.mxu0 %v267
  %336 = vmatprep.subr.bf16.mxu0 0
  %337 = vmatpush1.bf16.msra.mxu0 %v268
  %338 = vmatprep.subr.bf16.mxu0 0
  %339 = vmatpush1.bf16.msra.mxu0 %v269
  %340 = vmatprep.subr.bf16.mxu0 0
  %341 = vmatpush1.bf16.msra.mxu0 %v270
  %342 = vmatprep.subr.bf16.mxu0 0
  %343 = vmatpush1.bf16.msra.mxu0 %v271
  %344 = vmatprep.subr.bf16.mxu0 0
  %345 = vmatpush1.bf16.msra.mxu0 %v272
  %346 = vmatprep.subr.bf16.mxu0 0
  %347 = vmatpush1.bf16.msra.mxu0 %v273
  %348 = vmatprep.subr.bf16.mxu0 0
  %349 = vmatpush1.bf16.msra.mxu0 %v274
  %350 = vmatprep.subr.bf16.mxu0 0
  %351 = vmatpush1.bf16.msra.mxu0 %v275
  %352 = vmatprep.subr.bf16.mxu0 0
  %353 = vmatpush1.bf16.msra.mxu0 %v276
  %354 = vmatprep.subr.bf16.mxu0 0
  %355 = vmatpush1.bf16.msra.mxu0 %v277
  %356 = vmatprep.subr.bf16.mxu0 0
  %357 = vmatpush1.bf16.msra.mxu0 %v278
  %358 = vmatprep.subr.bf16.mxu0 0
  %359 = vmatpush1.bf16.msra.mxu0 %v279
  %360 = vmatprep.mubr.bf16.mxu0 %v65
  %361 = vmatmul.mubr.bf16.gmra.mrb[0].mxu0 %v64
  %v362 = vpop.f32.mrb[0].mxu0
  %v363 = vadd.f32 0.0, %v362
  %v364 = vpop.f32.mrb[0].mxu0
  %v365 = vpop.f32.mrb[0].mxu0
  %v366 = vadd.f32 0.0, %v365
  %v367 = vpop.f32.mrb[0].mxu0
  %368 = vmatprep.mubr.bf16.mxu0 %v69
  %369 = vmatmul.mubr.bf16.gmra.mrb[0].mxu0 %v68
  %v370 = vpop.f32.mrb[0].mxu0
  %v371 = vadd.f32 0.0, %v370
  %v372 = vpop.f32.mrb[0].mxu0
  %v373 = vpop.f32.mrb[0].mxu0
  %v374 = vadd.f32 0.0, %v373
  %v375 = vpop.f32.mrb[0].mxu0
  %376 = vdwg.mxu0
  %377 = vmatprep.subr.bf16.mxu0 0
  %378 = vmatpush1.bf16.msra.mxu0 %v280
  %379 = vmatprep.subr.bf16.mxu0 0
  %380 = vmatpush1.bf16.msra.mxu0 %v281
  %381 = vmatprep.subr.bf16.mxu0 0
  %382 = vmatpush1.bf16.msra.mxu0 %v282
  %383 = vmatprep.subr.bf16.mxu0 0
  %384 = vmatpush1.bf16.msra.mxu0 %v283
  %385 = vmatprep.subr.bf16.mxu0 0
  %386 = vmatpush1.bf16.msra.mxu0 %v284
  %387 = vmatprep.subr.bf16.mxu0 0
  %388 = vmatpush1.bf16.msra.mxu0 %v285
  %389 = vmatprep.subr.bf16.mxu0 0
  %390 = vmatpush1.bf16.msra.mxu0 %v286
  %391 = vmatprep.subr.bf16.mxu0 0
  %392 = vmatpush1.bf16.msra.mxu0 %v287
  %393 = vmatprep.subr.bf16.mxu0 0
  %394 = vmatpush1.bf16.msra.mxu0 %v288
  %395 = vmatprep.subr.bf16.mxu0 0
  %396 = vmatpush1.bf16.msra.mxu0 %v289
  %397 = vmatprep.subr.bf16.mxu0 0
  %398 = vmatpush1.bf16.msra.mxu0 %v290
  %399 = vmatprep.subr.bf16.mxu0 0
  %400 = vmatpush1.bf16.msra.mxu0 %v291
  %401 = vmatprep.subr.bf16.mxu0 0
  %402 = vmatpush1.bf16.msra.mxu0 %v292
  %403 = vmatprep.subr.bf16.mxu0 0
  %404 = vmatpush1.bf16.msra.mxu0 %v293
  %405 = vmatprep.subr.bf16.mxu0 0
  %406 = vmatpush1.bf16.msra.mxu0 %v294
  %407 = vmatprep.subr.bf16.mxu0 0
  %408 = vmatpush1.bf16.msra.mxu0 %v295
  %409 = vmatprep.mubr.bf16.mxu0 %v67
  %410 = vmatmul.mubr.bf16.gmra.mrb[0].mxu0 %v66
  %v411 = vpop.f32.mrb[0].mxu0
  %v412 = vadd.f32 %v363, %v411
  %v413 = vpop.f32.mrb[0].mxu0
  %v414 = vpop.f32.mrb[0].mxu0
  %v415 = vadd.f32 %v366, %v414
  %v416 = vpop.f32.mrb[0].mxu0
  %417 = vmatprep.mubr.bf16.mxu0 %v71
  %418 = vmatmul.mubr.bf16.gmra.mrb[0].mxu0 %v70
  %v419 = vpop.f32.mrb[0].mxu0
  %v420 = vadd.f32 %v371, %v419
  %v421 = vpop.f32.mrb[0].mxu0
  %v422 = vpop.f32.mrb[0].mxu0
  %v423 = vadd.f32 %v374, %v422
  %v424 = vpop.f32.mrb[0].mxu0
  %425 = vdwg.mxu0
  %v426 = vld [vmem:[%s4] sm:$0x1]
  %v427 = vld [vmem:[%s5] sm:$0x1]
  %v428 = vld [vmem:[%s10] sm:$0xff]
  %v429 = vld [vmem:[%s10 + $0x8] sm:$0xff]
  %v430 = vld [vmem:[%s10 + $0x10] sm:$0xff]
  %v431 = vld [vmem:[%s10 + $0x18] sm:$0xff]
  %v432 = vld [vmem:[%s10 + $0x20] sm:$0xff]
  %v433 = vld [vmem:[%s10 + $0x28] sm:$0xff]
  %v434 = vld [vmem:[%s10 + $0x30] sm:$0xff]
  %v435 = vld [vmem:[%s10 + $0x38] sm:$0xff]
  %v436 = vld [vmem:[%s10 + $0x40] sm:$0xff]
  %v437 = vld [vmem:[%s10 + $0x48] sm:$0xff]
  %v438 = vld [vmem:[%s10 + $0x50] sm:$0xff]
  %v439 = vld [vmem:[%s10 + $0x58] sm:$0xff]
  %v440 = vld [vmem:[%s10 + $0x60] sm:$0xff]
  %v441 = vld [vmem:[%s10 + $0x68] sm:$0xff]
  %v442 = vld [vmem:[%s10 + $0x70] sm:$0xff]
  %v443 = vld [vmem:[%s10 + $0x78] sm:$0xff]
  %v444 = vld [vmem:[%s11] sm:$0xff]
  %v445 = vadd.f32 %v412, %v415
  %v446 = vadd.f32 %v445, %v420
  %v447 = vadd.f32 %v446, %v423
  %v448 = vrot.slane %v447, 4
  %v449 = vadd.f32 %v447, %v448
  %v450 = vrot.slane %v449, 2
  %v451 = vadd.f32 %v449, %v450
  %v452 = vrot.slane %v451, 1
  %v453 = vadd.f32 %v451, %v452
  %v454 = vmul.f32 %v412, %v412
  %v455 = vmul.f32 %v415, %v415
  %v456 = vmul.f32 %v420, %v420
  %v457 = vmul.f32 %v423, %v423
  %v458 = vadd.f32 %v454, %v455
  %v459 = vadd.f32 %v458, %v456
  %v460 = vadd.f32 %v459, %v457
  %v461 = vrot.slane %v460, 4
  %v462 = vadd.f32 %v460, %v461
  %v463 = vrot.slane %v462, 2
  %v464 = vadd.f32 %v462, %v463
  %v465 = vrot.slane %v464, 1
  %v466 = vadd.f32 %v464, %v465
  %vm467 = vcmask 1040384
  %v468 = vsel %vm467, %v453, %v466
  %469 = vmatprep.subr.mxu0 0.0
  %470 = vmatpush1.msra.mxu0 %v428
  %471 = vmatprep.subr.mxu0 0.0
  %472 = vmatpush1.msra.mxu0 %v429
  %473 = vmatprep.subr.mxu0 0.0
  %474 = vmatpush1.msra.mxu0 %v430
  %475 = vmatprep.subr.mxu0 0.0
  %476 = vmatpush1.msra.mxu0 %v431
  %477 = vmatprep.subr.mxu0 0.0
  %478 = vmatpush1.msra.mxu0 %v432
  %479 = vmatprep.subr.mxu0 0.0
  %480 = vmatpush1.msra.mxu0 %v433
  %481 = vmatprep.subr.mxu0 0.0
  %482 = vmatpush1.msra.mxu0 %v434
  %483 = vmatprep.subr.mxu0 0.0
  %484 = vmatpush1.msra.mxu0 %v435
  %485 = vmatprep.subr.mxu0 0.0
  %486 = vmatpush1.msra.mxu0 %v436
  %487 = vmatprep.subr.mxu0 0.0
  %488 = vmatpush1.msra.mxu0 %v437
  %489 = vmatprep.subr.mxu0 0.0
  %490 = vmatpush1.msra.mxu0 %v438
  %491 = vmatprep.subr.mxu0 0.0
  %492 = vmatpush1.msra.mxu0 %v439
  %493 = vmatprep.subr.mxu0 0.0
  %494 = vmatpush1.msra.mxu0 %v440
  %495 = vmatprep.subr.mxu0 0.0
  %496 = vmatpush1.msra.mxu0 %v441
  %497 = vmatprep.subr.mxu0 0.0
  %498 = vmatpush1.msra.mxu0 %v442
  %499 = vmatprep.subr.mxu0 0.0
  %500 = vmatpush1.msra.mxu0 %v443
  %501 = vmatprep.subr.mxu0 0.0
  %502 = vmatpush1.msra.mxu0 0.0
  %503 = vmatprep.subr.mxu0 0.0
  %504 = vmatpush1.msra.mxu0 0.0
  %505 = vmatprep.subr.mxu0 0.0
  %506 = vmatpush1.msra.mxu0 0.0
  %507 = vmatprep.subr.mxu0 0.0
  %508 = vmatpush1.msra.mxu0 0.0
  %509 = vmatprep.subr.mxu0 0.0
  %510 = vmatpush1.msra.mxu0 0.0
  %511 = vmatprep.subr.mxu0 0.0
  %512 = vmatpush1.msra.mxu0 0.0
  %513 = vmatprep.subr.mxu0 0.0
  %514 = vmatpush1.msra.mxu0 0.0
  %515 = vmatprep.subr.mxu0 0.0
  %516 = vmatpush1.msra.mxu0 0.0
  %517 = vmatprep.subr.mxu0 0.0
  %518 = vmatpush1.msra.mxu0 0.0
  %519 = vmatprep.subr.mxu0 0.0
  %520 = vmatpush1.msra.mxu0 0.0
  %521 = vmatprep.subr.mxu0 0.0
  %522 = vmatpush1.msra.mxu0 0.0
  %523 = vmatprep.subr.mxu0 0.0
  %524 = vmatpush1.msra.mxu0 0.0
  %525 = vmatprep.subr.mxu0 0.0
  %526 = vmatpush1.msra.mxu0 0.0
  %527 = vmatprep.subr.mxu0 0.0
  %528 = vmatpush1.msra.mxu0 0.0
  %529 = vmatprep.subr.mxu0 0.0
  %530 = vmatpush1.msra.mxu0 0.0
  %531 = vmatprep.subr.mxu0 0.0
  %532 = vmatpush1.msra.mxu0 0.0
  %533 = vmatprep.mubr.f32.mxu0 0.0
  %534 = vmatmul.mubr.f32.gmra.mrb[0].mxu0 %v468
  %v535 = vpop.f32.mrb[0].mxu0
  %v536 = vadd.f32 0.0, %v535
  %v537 = vpop.f32.mrb[0].mxu0
  %538 = vdwg.mxu0
  %v539 = vmul.f32 %v536, 0.001953125
  %v540 = vmul.f32 %v539, %v539
  %v542 = vrot.slane %v540, 7
  %v544 = vsub.f32 %v539, %v542
  %v545 = vadd.f32 %v544, 1e-05
  %v546 = vrsqrt.pop %v545
  %v549 = vunpack.c.l.s4 1966171168
  %v550 = vunpack.c.0.s8 %v549
  %v551 = vlaneseq
  %v552 = vshrl.u32 %v551, 7
  %v553 = vsub.s32 %v550, %v552
  %v554 = vrot.slane %v546, %v553
  %v555 = vcombine.high %v554, %v554
  %v557 = vunpack.c.l.s4 1966171168
  %v558 = vunpack.c.0.s8 %v557
  %v559 = vlaneseq
  %v560 = vshrl.u32 %v559, 7
  %v561 = vsub.s32 %v558, %v560
  %v562 = vrot.slane %v555, %v561
  %v564 = vmul.f32 %v426, %v562
  %v565 = vmul.f32 %v539, %v564
  %v566 = vsub.f32 %v427, %v565
  %v568 = vlaneseq
  %v569 = vshrl.u32 %v568, 7
  %v570 = vsub.s32 0, %v569
  %v571 = vrot.slane %v566, %v570
  %v573 = vsel %vm467, %v564, %v571
  %vm574 = vcmask 64512
  %v576 = vsel %vm574, %v573, 0
  %578 = vmatprep.subr.mxu0 0.0
  %579 = vmatpush1.msra.mxu0 %v444
  %580 = vmatprep.subr.mxu0 0.0
  %581 = vmatpush1.msra.mxu0 0.0
  %582 = vmatprep.subr.mxu0 0.0
  %583 = vmatpush1.msra.mxu0 0.0
  %584 = vmatprep.subr.mxu0 0.0
  %585 = vmatpush1.msra.mxu0 0.0
  %586 = vmatprep.subr.mxu0 0.0
  %587 = vmatpush1.msra.mxu0 0.0
  %588 = vmatprep.subr.mxu0 0.0
  %589 = vmatpush1.msra.mxu0 0.0
  %590 = vmatprep.subr.mxu0 0.0
  %591 = vmatpush1.msra.mxu0 0.0
  %592 = vmatprep.subr.mxu0 0.0
  %593 = vmatpush1.msra.mxu0 0.0
  %594 = vmatprep.subr.mxu0 0.0
  %595 = vmatpush1.msra.mxu0 0.0
  %596 = vmatprep.subr.mxu0 0.0
  %597 = vmatpush1.msra.mxu0 0.0
  %598 = vmatprep.subr.mxu0 0.0
  %599 = vmatpush1.msra.mxu0 0.0
  %600 = vmatprep.subr.mxu0 0.0
  %601 = vmatpush1.msra.mxu0 0.0
  %602 = vmatprep.subr.mxu0 0.0
  %603 = vmatpush1.msra.mxu0 0.0
  %604 = vmatprep.subr.mxu0 0.0
  %605 = vmatpush1.msra.mxu0 0.0
  %606 = vmatprep.subr.mxu0 0.0
  %607 = vmatpush1.msra.mxu0 0.0
  %608 = vmatprep.subr.mxu0 0.0
  %609 = vmatpush1.msra.mxu0 0.0
  %610 = vmatprep.subr.mxu0 0.0
  %611 = vmatpush1.msra.mxu0 0.0
  %612 = vmatprep.subr.mxu0 0.0
  %613 = vmatpush1.msra.mxu0 0.0
  %614 = vmatprep.subr.mxu0 0.0
  %615 = vmatpush1.msra.mxu0 0.0
  %616 = vmatprep.subr.mxu0 0.0
  %617 = vmatpush1.msra.mxu0 0.0
  %618 = vmatprep.subr.mxu0 0.0
  %619 = vmatpush1.msra.mxu0 0.0
  %620 = vmatprep.subr.mxu0 0.0
  %621 = vmatpush1.msra.mxu0 0.0
  %622 = vmatprep.subr.mxu0 0.0
  %623 = vmatpush1.msra.mxu0 0.0
  %624 = vmatprep.subr.mxu0 0.0
  %625 = vmatpush1.msra.mxu0 0.0
  %626 = vmatprep.subr.mxu0 0.0
  %627 = vmatpush1.msra.mxu0 0.0
  %628 = vmatprep.subr.mxu0 0.0
  %629 = vmatpush1.msra.mxu0 0.0
  %630 = vmatprep.subr.mxu0 0.0
  %631 = vmatpush1.msra.mxu0 0.0
  %632 = vmatprep.subr.mxu0 0.0
  %633 = vmatpush1.msra.mxu0 0.0
  %634 = vmatprep.subr.mxu0 0.0
  %635 = vmatpush1.msra.mxu0 0.0
  %636 = vmatprep.subr.mxu0 0.0
  %637 = vmatpush1.msra.mxu0 0.0
  %638 = vmatprep.subr.mxu0 0.0
  %639 = vmatpush1.msra.mxu0 0.0
  %640 = vmatprep.subr.mxu0 0.0
  %641 = vmatpush1.msra.mxu0 0.0
  %642 = vmatprep.mubr.f32.mxu0 0.0
  %643 = vmatmul.mubr.f32.gmra.mrb[0].mxu0 %v576
  %v644 = vpop.f32.mrb[0].mxu0
  %v645 = vadd.f32 0.0, %v644
  %v646 = vpop.f32.mrb[0].mxu0
  %647 = vdwg.mxu0
  %v648 = vlaneseq
  %v649 = vshrl.u32 %v648, 7
  %v650 = vsub.s32 0, %v649
  %v651 = vrot.slane %v645, %v650
  %v652 = vmul.f32 %v412, %v651
  %v653 = vmul.f32 %v415, %v651
  %v654 = vmul.f32 %v420, %v651
  %v655 = vmul.f32 %v423, %v651
  %v656 = vlaneseq
  %v657 = vshrl.u32 %v656, 7
  %v658 = vsub.s32 1, %v657
  %v659 = vrot.slane %v645, %v658
  %v660 = vadd.f32 %v652, %v659
  %v661 = vadd.f32 %v653, %v659
  %v662 = vadd.f32 %v654, %v659
  %v663 = vadd.f32 %v655, %v659
  %v664 = vmax.f32 %v660, 0.0
  %v665 = vmax.f32 %v661, 0.0
  %v666 = vmax.f32 %v662, 0.0
  %v667 = vmax.f32 %v663, 0.0
  %v668 = vlaneseq
  %v669 = vshrl.u32 %v668, 7
  %v670 = vadd.s32 %v669, 8
  %vm671 = vcmp.eq.s32.totalorder %v669, 0
  %vm672 = vcmp.eq.s32.totalorder %v670, 0
  %v673 = vrot.slane %v664, 7
  %v674 = vrot.slane %v665, 7
  %v675 = vrot.slane %v666, 7
  %v676 = vrot.slane %v667, 7
  %vm677 = vcmp.lt.s32.totalorder %v669, 1
  %v678 = vsel %vm677, %v675, %v676
  %v679 = vsel %vm677, %v674, %v675
  %v680 = vsel %vm677, %v673, %v674
  %v681 = vsel %vm677, %v676, %v673
  %v682 = vsel %vm671, 0.0, %v681
  %v683 = vsel %vm672, 0.0, %v680
  %v684 = vsel %vm671, 0.0, %v679
  %v685 = vsel %vm672, 0.0, %v678
  %vm686 = vcmp.eq.s32.totalorder %v669, 15
  %vm687 = vcmp.eq.s32.totalorder %v670, 15
  %v688 = vrot.slane %v664, 1
  %v689 = vrot.slane %v665, 1
  %v690 = vrot.slane %v666, 1
  %v691 = vrot.slane %v667, 1
  %vm692 = vcmp.lt.s32.totalorder %v669, 7
  %v693 = vsel %vm692, %v690, %v691
  %v694 = vsel %vm692, %v689, %v690
  %v695 = vsel %vm692, %v688, %v689
  %v696 = vsel %vm692, %v691, %v688
  %v697 = vsel %vm686, 0.0, %v695
  %v698 = vsel %vm687, 0.0, %v694
  %v699 = vsel %vm686, 0.0, %v693
  %v700 = vsel %vm687, 0.0, %v696
  %v701 = vpack.c.bf16 %v683, %v682
  %v702 = vpack.c.bf16 %v665, %v664
  %v703 = vpack.c.bf16 %v698, %v697
  %v704 = vpack.c.bf16 %v685, %v684
  %v705 = vpack.c.bf16 %v667, %v666
  %v706 = vpack.c.bf16 %v700, %v699
  %v707 = vld [vmem:[%s2] sm:$0xf]
  %v708 = vld [vmem:[%s2 + $0x4] sm:$0xf]
  %v709 = vld [vmem:[%s2 + $0x8] sm:$0xf]
  %v710 = vld [vmem:[%s2 + $0xc] sm:$0xf]
  %v711 = vld [vmem:[%s2 + $0x10] sm:$0xf]
  %v712 = vld [vmem:[%s2 + $0x14] sm:$0xf]
  %v713 = vld [vmem:[%s2 + $0x18] sm:$0xf]
  %v714 = vld [vmem:[%s2 + $0x1c] sm:$0xf]
  %v715 = vld [vmem:[%s2 + $0x20] sm:$0xf]
  %v716 = vld [vmem:[%s2 + $0x24] sm:$0xf]
  %v717 = vld [vmem:[%s2 + $0x28] sm:$0xf]
  %v718 = vld [vmem:[%s2 + $0x2c] sm:$0xf]
  %v719 = vld [vmem:[%s2 + $0x30] sm:$0xf]
  %v720 = vld [vmem:[%s2 + $0x34] sm:$0xf]
  %v721 = vld [vmem:[%s2 + $0x38] sm:$0xf]
  %v722 = vld [vmem:[%s2 + $0x3c] sm:$0xf]
  %v723 = vld [vmem:[%s2 + $0x40] sm:$0xf]
  %v724 = vld [vmem:[%s2 + $0x44] sm:$0xf]
  %v725 = vld [vmem:[%s2 + $0x48] sm:$0xf]
  %v726 = vld [vmem:[%s2 + $0x4c] sm:$0xf]
  %v727 = vld [vmem:[%s2 + $0x50] sm:$0xf]
  %v728 = vld [vmem:[%s2 + $0x54] sm:$0xf]
  %v729 = vld [vmem:[%s2 + $0x58] sm:$0xf]
  %v730 = vld [vmem:[%s2 + $0x5c] sm:$0xf]
  %v731 = vld [vmem:[%s2 + $0x60] sm:$0xf]
  %v732 = vld [vmem:[%s2 + $0x64] sm:$0xf]
  %v733 = vld [vmem:[%s2 + $0x68] sm:$0xf]
  %v734 = vld [vmem:[%s2 + $0x6c] sm:$0xf]
  %v735 = vld [vmem:[%s2 + $0x70] sm:$0xf]
  %v736 = vld [vmem:[%s2 + $0x74] sm:$0xf]
  %v737 = vld [vmem:[%s2 + $0x78] sm:$0xf]
  %v738 = vld [vmem:[%s2 + $0x7c] sm:$0xf]
  %v739 = vld [vmem:[%s2 + $0x80] sm:$0xf]
  %v740 = vld [vmem:[%s2 + $0x84] sm:$0xf]
  %v741 = vld [vmem:[%s2 + $0x88] sm:$0xf]
  %v742 = vld [vmem:[%s2 + $0x8c] sm:$0xf]
  %v743 = vld [vmem:[%s2 + $0x90] sm:$0xf]
  %v744 = vld [vmem:[%s2 + $0x94] sm:$0xf]
  %v745 = vld [vmem:[%s2 + $0x98] sm:$0xf]
  %v746 = vld [vmem:[%s2 + $0x9c] sm:$0xf]
  %v747 = vld [vmem:[%s2 + $0xa0] sm:$0xf]
  %v748 = vld [vmem:[%s2 + $0xa4] sm:$0xf]
  %v749 = vld [vmem:[%s2 + $0xa8] sm:$0xf]
  %v750 = vld [vmem:[%s2 + $0xac] sm:$0xf]
  %v751 = vld [vmem:[%s2 + $0xb0] sm:$0xf]
  %v752 = vld [vmem:[%s2 + $0xb4] sm:$0xf]
  %v753 = vld [vmem:[%s2 + $0xb8] sm:$0xf]
  %v754 = vld [vmem:[%s2 + $0xbc] sm:$0xf]
  %v803 = vunpack.c.l.b16 %v707
  %v804 = vunpack.c.l.b16 %v708
  %v805 = vunpack.c.l.b16 %v709
  %v806 = vunpack.c.l.b16 %v710
  %v807 = vunpack.c.l.b16 %v711
  %v808 = vunpack.c.l.b16 %v712
  %v809 = vunpack.c.l.b16 %v713
  %v810 = vunpack.c.l.b16 %v714
  %v811 = vunpack.c.l.b16 %v715
  %v812 = vunpack.c.l.b16 %v716
  %v813 = vunpack.c.l.b16 %v717
  %v814 = vunpack.c.l.b16 %v718
  %v815 = vunpack.c.l.b16 %v719
  %v816 = vunpack.c.l.b16 %v720
  %v817 = vunpack.c.l.b16 %v721
  %v818 = vunpack.c.l.b16 %v722
  %v819 = vunpack.c.l.b16 %v723
  %v820 = vunpack.c.l.b16 %v724
  %v821 = vunpack.c.l.b16 %v725
  %v822 = vunpack.c.l.b16 %v726
  %v823 = vunpack.c.l.b16 %v727
  %v824 = vunpack.c.l.b16 %v728
  %v825 = vunpack.c.l.b16 %v729
  %v826 = vunpack.c.l.b16 %v730
  %v827 = vunpack.c.l.b16 %v731
  %v828 = vunpack.c.l.b16 %v732
  %v829 = vunpack.c.l.b16 %v733
  %v830 = vunpack.c.l.b16 %v734
  %v831 = vunpack.c.l.b16 %v735
  %v832 = vunpack.c.l.b16 %v736
  %v833 = vunpack.c.l.b16 %v737
  %v834 = vunpack.c.l.b16 %v738
  %v835 = vunpack.c.l.b16 %v739
  %v836 = vunpack.c.l.b16 %v740
  %v837 = vunpack.c.l.b16 %v741
  %v838 = vunpack.c.l.b16 %v742
  %v839 = vunpack.c.l.b16 %v743
  %v840 = vunpack.c.l.b16 %v744
  %v841 = vunpack.c.l.b16 %v745
  %v842 = vunpack.c.l.b16 %v746
  %v843 = vunpack.c.l.b16 %v747
  %v844 = vunpack.c.l.b16 %v748
  %v845 = vunpack.c.l.b16 %v749
  %v846 = vunpack.c.l.b16 %v750
  %v847 = vunpack.c.l.b16 %v751
  %v848 = vunpack.c.l.b16 %v752
  %v849 = vunpack.c.l.b16 %v753
  %v850 = vunpack.c.l.b16 %v754
  %v851 = vpack.c.b16 %v804, %v803
  %v852 = vpack.c.b16 %v806, %v805
  %v853 = vpack.c.b16 %v808, %v807
  %v854 = vpack.c.b16 %v810, %v809
  %v855 = vpack.c.b16 %v812, %v811
  %v856 = vpack.c.b16 %v814, %v813
  %v857 = vpack.c.b16 %v816, %v815
  %v858 = vpack.c.b16 %v818, %v817
  %v859 = vpack.c.b16 %v820, %v819
  %v860 = vpack.c.b16 %v822, %v821
  %v861 = vpack.c.b16 %v824, %v823
  %v862 = vpack.c.b16 %v826, %v825
  %v863 = vpack.c.b16 %v828, %v827
  %v864 = vpack.c.b16 %v830, %v829
  %v865 = vpack.c.b16 %v832, %v831
  %v866 = vpack.c.b16 %v834, %v833
  %v867 = vpack.c.b16 %v836, %v835
  %v868 = vpack.c.b16 %v838, %v837
  %v869 = vpack.c.b16 %v840, %v839
  %v870 = vpack.c.b16 %v842, %v841
  %v871 = vpack.c.b16 %v844, %v843
  %v872 = vpack.c.b16 %v846, %v845
  %v873 = vpack.c.b16 %v848, %v847
  %v874 = vpack.c.b16 %v850, %v849
  %899 = vmatprep.subr.bf16.mxu0 0
  %900 = vmatpush1.bf16.msra.mxu0 %v851
  %901 = vmatprep.subr.bf16.mxu0 0
  %902 = vmatpush1.bf16.msra.mxu0 %v852
  %903 = vmatprep.subr.bf16.mxu0 0
  %904 = vmatpush1.bf16.msra.mxu0 %v853
  %905 = vmatprep.subr.bf16.mxu0 0
  %906 = vmatpush1.bf16.msra.mxu0 %v854
  %907 = vmatprep.subr.bf16.mxu0 0
  %908 = vmatpush1.bf16.msra.mxu0 %v855
  %909 = vmatprep.subr.bf16.mxu0 0
  %910 = vmatpush1.bf16.msra.mxu0 %v856
  %911 = vmatprep.subr.bf16.mxu0 0
  %912 = vmatpush1.bf16.msra.mxu0 %v857
  %913 = vmatprep.subr.bf16.mxu0 0
  %914 = vmatpush1.bf16.msra.mxu0 %v858
  %915 = vmatprep.subr.bf16.mxu0 0
  %916 = vmatpush1.bf16.msra.mxu0 %v859
  %917 = vmatprep.subr.bf16.mxu0 0
  %918 = vmatpush1.bf16.msra.mxu0 %v860
  %919 = vmatprep.subr.bf16.mxu0 0
  %920 = vmatpush1.bf16.msra.mxu0 %v861
  %921 = vmatprep.subr.bf16.mxu0 0
  %922 = vmatpush1.bf16.msra.mxu0 %v862
  %923 = vmatprep.subr.bf16.mxu0 0
  %924 = vmatpush1.bf16.msra.mxu0 %v863
  %925 = vmatprep.subr.bf16.mxu0 0
  %926 = vmatpush1.bf16.msra.mxu0 %v864
  %927 = vmatprep.subr.bf16.mxu0 0
  %928 = vmatpush1.bf16.msra.mxu0 %v865
  %929 = vmatprep.subr.bf16.mxu0 0
  %930 = vmatpush1.bf16.msra.mxu0 %v866
  %931 = vmatprep.mubr.bf16.mxu0 %v702
  %932 = vmatmul.mubr.bf16.gmra.mrb[0].mxu0 %v701
  %v933 = vpop.f32.mrb[0].mxu0
  %v934 = vadd.f32 0.0, %v933
  %v935 = vpop.f32.mrb[0].mxu0
  %v936 = vpop.f32.mrb[0].mxu0
  %v937 = vadd.f32 0.0, %v936
  %v938 = vpop.f32.mrb[0].mxu0
  %939 = vmatprep.mubr.bf16.mxu0 %v705
  %940 = vmatmul.mubr.bf16.gmra.mrb[0].mxu0 %v704
  %v941 = vpop.f32.mrb[0].mxu0
  %v942 = vadd.f32 0.0, %v941
  %v943 = vpop.f32.mrb[0].mxu0
  %v944 = vpop.f32.mrb[0].mxu0
  %v945 = vadd.f32 0.0, %v944
  %v946 = vpop.f32.mrb[0].mxu0
  %947 = vdwg.mxu0
  %948 = vmatprep.subr.bf16.mxu0 0
  %949 = vmatpush1.bf16.msra.mxu0 %v867
  %950 = vmatprep.subr.bf16.mxu0 0
  %951 = vmatpush1.bf16.msra.mxu0 %v868
  %952 = vmatprep.subr.bf16.mxu0 0
  %953 = vmatpush1.bf16.msra.mxu0 %v869
  %954 = vmatprep.subr.bf16.mxu0 0
  %955 = vmatpush1.bf16.msra.mxu0 %v870
  %956 = vmatprep.subr.bf16.mxu0 0
  %957 = vmatpush1.bf16.msra.mxu0 %v871
  %958 = vmatprep.subr.bf16.mxu0 0
  %959 = vmatpush1.bf16.msra.mxu0 %v872
  %960 = vmatprep.subr.bf16.mxu0 0
  %961 = vmatpush1.bf16.msra.mxu0 %v873
  %962 = vmatprep.subr.bf16.mxu0 0
  %963 = vmatpush1.bf16.msra.mxu0 %v874
  %964 = vmatprep.subr.bf16.mxu0 0
  %965 = vmatpush1.bf16.msra.mxu0 0
  %966 = vmatprep.subr.bf16.mxu0 0
  %967 = vmatpush1.bf16.msra.mxu0 0
  %968 = vmatprep.subr.bf16.mxu0 0
  %969 = vmatpush1.bf16.msra.mxu0 0
  %970 = vmatprep.subr.bf16.mxu0 0
  %971 = vmatpush1.bf16.msra.mxu0 0
  %972 = vmatprep.subr.bf16.mxu0 0
  %973 = vmatpush1.bf16.msra.mxu0 0
  %974 = vmatprep.subr.bf16.mxu0 0
  %975 = vmatpush1.bf16.msra.mxu0 0
  %976 = vmatprep.subr.bf16.mxu0 0
  %977 = vmatpush1.bf16.msra.mxu0 0
  %978 = vmatprep.subr.bf16.mxu0 0
  %979 = vmatpush1.bf16.msra.mxu0 0
  %980 = vmatprep.mubr.bf16.mxu0 0
  %981 = vmatmul.mubr.bf16.gmra.mrb[0].mxu0 %v703
  %v982 = vpop.f32.mrb[0].mxu0
  %v983 = vadd.f32 %v934, %v982
  %v984 = vpop.f32.mrb[0].mxu0
  %v985 = vpop.f32.mrb[0].mxu0
  %v986 = vadd.f32 %v937, %v985
  %v987 = vpop.f32.mrb[0].mxu0
  %988 = vmatprep.mubr.bf16.mxu0 0
  %989 = vmatmul.mubr.bf16.gmra.mrb[0].mxu0 %v706
  %v990 = vpop.f32.mrb[0].mxu0
  %v991 = vadd.f32 %v942, %v990
  %v992 = vpop.f32.mrb[0].mxu0
  %v993 = vpop.f32.mrb[0].mxu0
  %v994 = vadd.f32 %v945, %v993
  %v995 = vpop.f32.mrb[0].mxu0
  %996 = vdwg.mxu0
  %v997 = vld [vmem:[%s6] sm:$0x1]
  %v998 = vld [vmem:[%s7] sm:$0x1]
  %v999 = vadd.f32 %v983, %v986
  %v1000 = vadd.f32 %v999, %v991
  %v1001 = vadd.f32 %v1000, %v994
  %v1002 = vrot.slane %v1001, 4
  %v1003 = vadd.f32 %v1001, %v1002
  %v1004 = vrot.slane %v1003, 2
  %v1005 = vadd.f32 %v1003, %v1004
  %v1006 = vrot.slane %v1005, 1
  %v1007 = vadd.f32 %v1005, %v1006
  %v1008 = vmul.f32 %v983, %v983
  %v1009 = vmul.f32 %v986, %v986
  %v1010 = vmul.f32 %v991, %v991
  %v1011 = vmul.f32 %v994, %v994
  %v1012 = vadd.f32 %v1008, %v1009
  %v1013 = vadd.f32 %v1012, %v1010
  %v1014 = vadd.f32 %v1013, %v1011
  %v1015 = vrot.slane %v1014, 4
  %v1016 = vadd.f32 %v1014, %v1015
  %v1017 = vrot.slane %v1016, 2
  %v1018 = vadd.f32 %v1016, %v1017
  %v1019 = vrot.slane %v1018, 1
  %v1020 = vadd.f32 %v1018, %v1019
  %v1021 = vsel %vm467, %v1007, %v1020
  %1022 = vmatprep.subr.mxu0 0.0
  %1023 = vmatpush1.msra.mxu0 %v428
  %1024 = vmatprep.subr.mxu0 0.0
  %1025 = vmatpush1.msra.mxu0 %v429
  %1026 = vmatprep.subr.mxu0 0.0
  %1027 = vmatpush1.msra.mxu0 %v430
  %1028 = vmatprep.subr.mxu0 0.0
  %1029 = vmatpush1.msra.mxu0 %v431
  %1030 = vmatprep.subr.mxu0 0.0
  %1031 = vmatpush1.msra.mxu0 %v432
  %1032 = vmatprep.subr.mxu0 0.0
  %1033 = vmatpush1.msra.mxu0 %v433
  %1034 = vmatprep.subr.mxu0 0.0
  %1035 = vmatpush1.msra.mxu0 %v434
  %1036 = vmatprep.subr.mxu0 0.0
  %1037 = vmatpush1.msra.mxu0 %v435
  %1038 = vmatprep.subr.mxu0 0.0
  %1039 = vmatpush1.msra.mxu0 %v436
  %1040 = vmatprep.subr.mxu0 0.0
  %1041 = vmatpush1.msra.mxu0 %v437
  %1042 = vmatprep.subr.mxu0 0.0
  %1043 = vmatpush1.msra.mxu0 %v438
  %1044 = vmatprep.subr.mxu0 0.0
  %1045 = vmatpush1.msra.mxu0 %v439
  %1046 = vmatprep.subr.mxu0 0.0
  %1047 = vmatpush1.msra.mxu0 %v440
  %1048 = vmatprep.subr.mxu0 0.0
  %1049 = vmatpush1.msra.mxu0 %v441
  %1050 = vmatprep.subr.mxu0 0.0
  %1051 = vmatpush1.msra.mxu0 %v442
  %1052 = vmatprep.subr.mxu0 0.0
  %1053 = vmatpush1.msra.mxu0 %v443
  %1054 = vmatprep.subr.mxu0 0.0
  %1055 = vmatpush1.msra.mxu0 0.0
  %1056 = vmatprep.subr.mxu0 0.0
  %1057 = vmatpush1.msra.mxu0 0.0
  %1058 = vmatprep.subr.mxu0 0.0
  %1059 = vmatpush1.msra.mxu0 0.0
  %1060 = vmatprep.subr.mxu0 0.0
  %1061 = vmatpush1.msra.mxu0 0.0
  %1062 = vmatprep.subr.mxu0 0.0
  %1063 = vmatpush1.msra.mxu0 0.0
  %1064 = vmatprep.subr.mxu0 0.0
  %1065 = vmatpush1.msra.mxu0 0.0
  %1066 = vmatprep.subr.mxu0 0.0
  %1067 = vmatpush1.msra.mxu0 0.0
  %1068 = vmatprep.subr.mxu0 0.0
  %1069 = vmatpush1.msra.mxu0 0.0
  %1070 = vmatprep.subr.mxu0 0.0
  %1071 = vmatpush1.msra.mxu0 0.0
  %1072 = vmatprep.subr.mxu0 0.0
  %1073 = vmatpush1.msra.mxu0 0.0
  %1074 = vmatprep.subr.mxu0 0.0
  %1075 = vmatpush1.msra.mxu0 0.0
  %1076 = vmatprep.subr.mxu0 0.0
  %1077 = vmatpush1.msra.mxu0 0.0
  %1078 = vmatprep.subr.mxu0 0.0
  %1079 = vmatpush1.msra.mxu0 0.0
  %1080 = vmatprep.subr.mxu0 0.0
  %1081 = vmatpush1.msra.mxu0 0.0
  %1082 = vmatprep.subr.mxu0 0.0
  %1083 = vmatpush1.msra.mxu0 0.0
  %1084 = vmatprep.subr.mxu0 0.0
  %1085 = vmatpush1.msra.mxu0 0.0
  %1086 = vmatprep.mubr.f32.mxu0 0.0
  %1087 = vmatmul.mubr.f32.gmra.mrb[0].mxu0 %v1021
  %v1088 = vpop.f32.mrb[0].mxu0
  %v1089 = vadd.f32 0.0, %v1088
  %v1090 = vpop.f32.mrb[0].mxu0
  %1091 = vdwg.mxu0
  %v1092 = vmul.f32 %v1089, 0.001953125
  %v1093 = vmul.f32 %v1092, %v1092
  %v1095 = vrot.slane %v1093, 7
  %v1097 = vsub.f32 %v1092, %v1095
  %v1098 = vadd.f32 %v1097, 1e-05
  %v1099 = vrsqrt.pop %v1098
  %v1102 = vunpack.c.l.s4 1966171168
  %v1103 = vunpack.c.0.s8 %v1102
  %v1104 = vlaneseq
  %v1105 = vshrl.u32 %v1104, 7
  %v1106 = vsub.s32 %v1103, %v1105
  %v1107 = vrot.slane %v1099, %v1106
  %v1108 = vcombine.high %v1107, %v1107
  %v1110 = vunpack.c.l.s4 1966171168
  %v1111 = vunpack.c.0.s8 %v1110
  %v1112 = vlaneseq
  %v1113 = vshrl.u32 %v1112, 7
  %v1114 = vsub.s32 %v1111, %v1113
  %v1115 = vrot.slane %v1108, %v1114
  %v1117 = vmul.f32 %v997, %v1115
  %v1118 = vmul.f32 %v1092, %v1117
  %v1119 = vsub.f32 %v998, %v1118
  %v1121 = vlaneseq
  %v1122 = vshrl.u32 %v1121, 7
  %v1123 = vsub.s32 0, %v1122
  %v1124 = vrot.slane %v1119, %v1123
  %v1126 = vsel %vm467, %v1117, %v1124
  %v1128 = vsel %vm574, %v1126, 0
  %1130 = vmatprep.subr.mxu0 0.0
  %1131 = vmatpush1.msra.mxu0 %v444
  %1132 = vmatprep.subr.mxu0 0.0
  %1133 = vmatpush1.msra.mxu0 0.0
  %1134 = vmatprep.subr.mxu0 0.0
  %1135 = vmatpush1.msra.mxu0 0.0
  %1136 = vmatprep.subr.mxu0 0.0
  %1137 = vmatpush1.msra.mxu0 0.0
  %1138 = vmatprep.subr.mxu0 0.0
  %1139 = vmatpush1.msra.mxu0 0.0
  %1140 = vmatprep.subr.mxu0 0.0
  %1141 = vmatpush1.msra.mxu0 0.0
  %1142 = vmatprep.subr.mxu0 0.0
  %1143 = vmatpush1.msra.mxu0 0.0
  %1144 = vmatprep.subr.mxu0 0.0
  %1145 = vmatpush1.msra.mxu0 0.0
  %1146 = vmatprep.subr.mxu0 0.0
  %1147 = vmatpush1.msra.mxu0 0.0
  %1148 = vmatprep.subr.mxu0 0.0
  %1149 = vmatpush1.msra.mxu0 0.0
  %1150 = vmatprep.subr.mxu0 0.0
  %1151 = vmatpush1.msra.mxu0 0.0
  %1152 = vmatprep.subr.mxu0 0.0
  %1153 = vmatpush1.msra.mxu0 0.0
  %1154 = vmatprep.subr.mxu0 0.0
  %1155 = vmatpush1.msra.mxu0 0.0
  %1156 = vmatprep.subr.mxu0 0.0
  %1157 = vmatpush1.msra.mxu0 0.0
  %1158 = vmatprep.subr.mxu0 0.0
  %1159 = vmatpush1.msra.mxu0 0.0
  %1160 = vmatprep.subr.mxu0 0.0
  %1161 = vmatpush1.msra.mxu0 0.0
  %1162 = vmatprep.subr.mxu0 0.0
  %1163 = vmatpush1.msra.mxu0 0.0
  %1164 = vmatprep.subr.mxu0 0.0
  %1165 = vmatpush1.msra.mxu0 0.0
  %1166 = vmatprep.subr.mxu0 0.0
  %1167 = vmatpush1.msra.mxu0 0.0
  %1168 = vmatprep.subr.mxu0 0.0
  %1169 = vmatpush1.msra.mxu0 0.0
  %1170 = vmatprep.subr.mxu0 0.0
  %1171 = vmatpush1.msra.mxu0 0.0
  %1172 = vmatprep.subr.mxu0 0.0
  %1173 = vmatpush1.msra.mxu0 0.0
  %1174 = vmatprep.subr.mxu0 0.0
  %1175 = vmatpush1.msra.mxu0 0.0
  %1176 = vmatprep.subr.mxu0 0.0
  %1177 = vmatpush1.msra.mxu0 0.0
  %1178 = vmatprep.subr.mxu0 0.0
  %1179 = vmatpush1.msra.mxu0 0.0
  %1180 = vmatprep.subr.mxu0 0.0
  %1181 = vmatpush1.msra.mxu0 0.0
  %1182 = vmatprep.subr.mxu0 0.0
  %1183 = vmatpush1.msra.mxu0 0.0
  %1184 = vmatprep.subr.mxu0 0.0
  %1185 = vmatpush1.msra.mxu0 0.0
  %1186 = vmatprep.subr.mxu0 0.0
  %1187 = vmatpush1.msra.mxu0 0.0
  %1188 = vmatprep.subr.mxu0 0.0
  %1189 = vmatpush1.msra.mxu0 0.0
  %1190 = vmatprep.subr.mxu0 0.0
  %1191 = vmatpush1.msra.mxu0 0.0
  %1192 = vmatprep.subr.mxu0 0.0
  %1193 = vmatpush1.msra.mxu0 0.0
  %1194 = vmatprep.mubr.f32.mxu0 0.0
  %1195 = vmatmul.mubr.f32.gmra.mrb[0].mxu0 %v1128
  %v1196 = vpop.f32.mrb[0].mxu0
  %v1197 = vadd.f32 0.0, %v1196
  %v1198 = vpop.f32.mrb[0].mxu0
  %1199 = vdwg.mxu0
  %v1200 = vlaneseq
  %v1201 = vshrl.u32 %v1200, 7
  %v1202 = vsub.s32 0, %v1201
  %v1203 = vrot.slane %v1197, %v1202
  %v1204 = vmul.f32 %v983, %v1203
  %v1205 = vmul.f32 %v986, %v1203
  %v1206 = vmul.f32 %v991, %v1203
  %v1207 = vmul.f32 %v994, %v1203
  %v1208 = vlaneseq
  %v1209 = vshrl.u32 %v1208, 7
  %v1210 = vsub.s32 1, %v1209
  %v1211 = vrot.slane %v1197, %v1210
  %v1212 = vadd.f32 %v1204, %v1211
  %v1213 = vadd.f32 %v1205, %v1211
  %v1214 = vadd.f32 %v1206, %v1211
  %v1215 = vadd.f32 %v1207, %v1211
  %v1216 = vmax.f32 %v1212, 0.0
  %v1217 = vmax.f32 %v1213, 0.0
  %v1218 = vmax.f32 %v1214, 0.0
  %v1219 = vmax.f32 %v1215, 0.0
  %v1220 = vpack.c.bf16 %v1217, %v1216
  %v1221 = vpack.c.bf16 %v1219, %v1218
  %v1222 = vld [vmem:[%s3] sm:$0xff]
  %v1223 = vld [vmem:[%s3 + $0x8] sm:$0xff]
  %v1224 = vld [vmem:[%s3 + $0x10] sm:$0xff]
  %v1225 = vld [vmem:[%s3 + $0x18] sm:$0xff]
  %v1226 = vld [vmem:[%s3 + $0x20] sm:$0xff]
  %v1227 = vld [vmem:[%s3 + $0x28] sm:$0xff]
  %v1228 = vld [vmem:[%s3 + $0x30] sm:$0xff]
  %v1229 = vld [vmem:[%s3 + $0x38] sm:$0xff]
  %v1230 = vld [vmem:[%s3 + $0x40] sm:$0xff]
  %v1231 = vld [vmem:[%s3 + $0x48] sm:$0xff]
  %v1232 = vld [vmem:[%s3 + $0x50] sm:$0xff]
  %v1233 = vld [vmem:[%s3 + $0x58] sm:$0xff]
  %v1234 = vld [vmem:[%s3 + $0x60] sm:$0xff]
  %v1235 = vld [vmem:[%s3 + $0x68] sm:$0xff]
  %v1236 = vld [vmem:[%s3 + $0x70] sm:$0xff]
  %v1237 = vld [vmem:[%s3 + $0x78] sm:$0xff]
  %v1238 = vld [vmem:[%s3 + $0x80] sm:$0xff]
  %v1239 = vld [vmem:[%s3 + $0x88] sm:$0xff]
  %v1240 = vld [vmem:[%s3 + $0x90] sm:$0xff]
  %v1241 = vld [vmem:[%s3 + $0x98] sm:$0xff]
  %v1242 = vld [vmem:[%s3 + $0xa0] sm:$0xff]
  %v1243 = vld [vmem:[%s3 + $0xa8] sm:$0xff]
  %v1244 = vld [vmem:[%s3 + $0xb0] sm:$0xff]
  %v1245 = vld [vmem:[%s3 + $0xb8] sm:$0xff]
  %v1246 = vld [vmem:[%s3 + $0xc0] sm:$0xff]
  %v1247 = vld [vmem:[%s3 + $0xc8] sm:$0xff]
  %v1248 = vld [vmem:[%s3 + $0xd0] sm:$0xff]
  %v1249 = vld [vmem:[%s3 + $0xd8] sm:$0xff]
  %v1250 = vld [vmem:[%s3 + $0xe0] sm:$0xff]
  %v1251 = vld [vmem:[%s3 + $0xe8] sm:$0xff]
  %v1252 = vld [vmem:[%s3 + $0xf0] sm:$0xff]
  %v1253 = vld [vmem:[%s3 + $0xf8] sm:$0xff]
  %v1286 = vunpack.c.l.b16 %v1222
  %v1287 = vunpack.c.h.b16 %v1222
  %v1288 = vunpack.c.l.b16 %v1223
  %v1289 = vunpack.c.h.b16 %v1223
  %v1290 = vunpack.c.l.b16 %v1224
  %v1291 = vunpack.c.h.b16 %v1224
  %v1292 = vunpack.c.l.b16 %v1225
  %v1293 = vunpack.c.h.b16 %v1225
  %v1294 = vunpack.c.l.b16 %v1226
  %v1295 = vunpack.c.h.b16 %v1226
  %v1296 = vunpack.c.l.b16 %v1227
  %v1297 = vunpack.c.h.b16 %v1227
  %v1298 = vunpack.c.l.b16 %v1228
  %v1299 = vunpack.c.h.b16 %v1228
  %v1300 = vunpack.c.l.b16 %v1229
  %v1301 = vunpack.c.h.b16 %v1229
  %v1302 = vunpack.c.l.b16 %v1230
  %v1303 = vunpack.c.h.b16 %v1230
  %v1304 = vunpack.c.l.b16 %v1231
  %v1305 = vunpack.c.h.b16 %v1231
  %v1306 = vunpack.c.l.b16 %v1232
  %v1307 = vunpack.c.h.b16 %v1232
  %v1308 = vunpack.c.l.b16 %v1233
  %v1309 = vunpack.c.h.b16 %v1233
  %v1310 = vunpack.c.l.b16 %v1234
  %v1311 = vunpack.c.h.b16 %v1234
  %v1312 = vunpack.c.l.b16 %v1235
  %v1313 = vunpack.c.h.b16 %v1235
  %v1314 = vunpack.c.l.b16 %v1236
  %v1315 = vunpack.c.h.b16 %v1236
  %v1316 = vunpack.c.l.b16 %v1237
  %v1317 = vunpack.c.h.b16 %v1237
  %v1318 = vunpack.c.l.b16 %v1238
  %v1319 = vunpack.c.h.b16 %v1238
  %v1320 = vunpack.c.l.b16 %v1239
  %v1321 = vunpack.c.h.b16 %v1239
  %v1322 = vunpack.c.l.b16 %v1240
  %v1323 = vunpack.c.h.b16 %v1240
  %v1324 = vunpack.c.l.b16 %v1241
  %v1325 = vunpack.c.h.b16 %v1241
  %v1326 = vunpack.c.l.b16 %v1242
  %v1327 = vunpack.c.h.b16 %v1242
  %v1328 = vunpack.c.l.b16 %v1243
  %v1329 = vunpack.c.h.b16 %v1243
  %v1330 = vunpack.c.l.b16 %v1244
  %v1331 = vunpack.c.h.b16 %v1244
  %v1332 = vunpack.c.l.b16 %v1245
  %v1333 = vunpack.c.h.b16 %v1245
  %v1334 = vunpack.c.l.b16 %v1246
  %v1335 = vunpack.c.h.b16 %v1246
  %v1336 = vunpack.c.l.b16 %v1247
  %v1337 = vunpack.c.h.b16 %v1247
  %v1338 = vunpack.c.l.b16 %v1248
  %v1339 = vunpack.c.h.b16 %v1248
  %v1340 = vunpack.c.l.b16 %v1249
  %v1341 = vunpack.c.h.b16 %v1249
  %v1342 = vunpack.c.l.b16 %v1250
  %v1343 = vunpack.c.h.b16 %v1250
  %v1344 = vunpack.c.l.b16 %v1251
  %v1345 = vunpack.c.h.b16 %v1251
  %v1346 = vunpack.c.l.b16 %v1252
  %v1347 = vunpack.c.h.b16 %v1252
  %v1348 = vunpack.c.l.b16 %v1253
  %v1349 = vunpack.c.h.b16 %v1253
  %v1350 = vpack.c.b16 %v1290, %v1286
  %v1351 = vpack.c.b16 %v1291, %v1287
  %v1352 = vpack.c.b16 %v1292, %v1288
  %v1353 = vpack.c.b16 %v1293, %v1289
  %v1354 = vpack.c.b16 %v1298, %v1294
  %v1355 = vpack.c.b16 %v1299, %v1295
  %v1356 = vpack.c.b16 %v1300, %v1296
  %v1357 = vpack.c.b16 %v1301, %v1297
  %v1358 = vpack.c.b16 %v1306, %v1302
  %v1359 = vpack.c.b16 %v1307, %v1303
  %v1360 = vpack.c.b16 %v1308, %v1304
  %v1361 = vpack.c.b16 %v1309, %v1305
  %v1362 = vpack.c.b16 %v1314, %v1310
  %v1363 = vpack.c.b16 %v1315, %v1311
  %v1364 = vpack.c.b16 %v1316, %v1312
  %v1365 = vpack.c.b16 %v1317, %v1313
  %v1366 = vpack.c.b16 %v1322, %v1318
  %v1367 = vpack.c.b16 %v1323, %v1319
  %v1368 = vpack.c.b16 %v1324, %v1320
  %v1369 = vpack.c.b16 %v1325, %v1321
  %v1370 = vpack.c.b16 %v1330, %v1326
  %v1371 = vpack.c.b16 %v1331, %v1327
  %v1372 = vpack.c.b16 %v1332, %v1328
  %v1373 = vpack.c.b16 %v1333, %v1329
  %v1374 = vpack.c.b16 %v1338, %v1334
  %v1375 = vpack.c.b16 %v1339, %v1335
  %v1376 = vpack.c.b16 %v1340, %v1336
  %v1377 = vpack.c.b16 %v1341, %v1337
  %v1378 = vpack.c.b16 %v1346, %v1342
  %v1379 = vpack.c.b16 %v1347, %v1343
  %v1380 = vpack.c.b16 %v1348, %v1344
  %v1381 = vpack.c.b16 %v1349, %v1345
  %1414 = vmatprep.subr.bf16.mxu0 %v1351
  %1415 = vmatpush1.bf16.msra.mxu0 %v1350
  %1416 = vmatprep.subr.bf16.mxu0 %v1355
  %1417 = vmatpush1.bf16.msra.mxu0 %v1354
  %1418 = vmatprep.subr.bf16.mxu0 %v1359
  %1419 = vmatpush1.bf16.msra.mxu0 %v1358
  %1420 = vmatprep.subr.bf16.mxu0 %v1363
  %1421 = vmatpush1.bf16.msra.mxu0 %v1362
  %1422 = vmatprep.subr.bf16.mxu0 %v1367
  %1423 = vmatpush1.bf16.msra.mxu0 %v1366
  %1424 = vmatprep.subr.bf16.mxu0 %v1371
  %1425 = vmatpush1.bf16.msra.mxu0 %v1370
  %1426 = vmatprep.subr.bf16.mxu0 %v1375
  %1427 = vmatpush1.bf16.msra.mxu0 %v1374
  %1428 = vmatprep.subr.bf16.mxu0 %v1379
  %1429 = vmatpush1.bf16.msra.mxu0 %v1378
  %1430 = vmatprep.subr.bf16.mxu0 0
  %1431 = vmatpush1.bf16.msra.mxu0 0
  %1432 = vmatprep.subr.bf16.mxu0 0
  %1433 = vmatpush1.bf16.msra.mxu0 0
  %1434 = vmatprep.subr.bf16.mxu0 0
  %1435 = vmatpush1.bf16.msra.mxu0 0
  %1436 = vmatprep.subr.bf16.mxu0 0
  %1437 = vmatpush1.bf16.msra.mxu0 0
  %1438 = vmatprep.subr.bf16.mxu0 0
  %1439 = vmatpush1.bf16.msra.mxu0 0
  %1440 = vmatprep.subr.bf16.mxu0 0
  %1441 = vmatpush1.bf16.msra.mxu0 0
  %1442 = vmatprep.subr.bf16.mxu0 0
  %1443 = vmatpush1.bf16.msra.mxu0 0
  %1444 = vmatprep.subr.bf16.mxu0 0
  %1445 = vmatpush1.bf16.msra.mxu0 0
  %1446 = vmatprep.mubr.bf16.mxu0 0
  %1447 = vmatmul.mubr.bf16.gmra.mrb[0].mxu0 %v1220
  %v1448 = vpop.f32.mrb[0].mxu0
  %v1449 = vadd.f32 0.0, %v1448
  %v1450 = vpop.f32.mrb[0].mxu0
  %v1451 = vadd.f32 0.0, %v1450
  %v1452 = vpop.f32.mrb[0].mxu0
  %v1453 = vadd.f32 0.0, %v1452
  %v1454 = vpop.f32.mrb[0].mxu0
  %v1455 = vadd.f32 0.0, %v1454
  %1456 = vmatprep.mubr.bf16.mxu0 0
  %1457 = vmatmul.mubr.bf16.gmra.mrb[0].mxu0 %v1221
  %v1458 = vpop.f32.mrb[0].mxu0
  %v1459 = vadd.f32 0.0, %v1458
  %v1460 = vpop.f32.mrb[0].mxu0
  %v1461 = vadd.f32 0.0, %v1460
  %v1462 = vpop.f32.mrb[0].mxu0
  %v1463 = vadd.f32 0.0, %v1462
  %v1464 = vpop.f32.mrb[0].mxu0
  %v1465 = vadd.f32 0.0, %v1464
  %1466 = vdwg.mxu0
  %1467 = vmatprep.subr.bf16.mxu0 %v1353
  %1468 = vmatpush1.bf16.msra.mxu0 %v1352
  %1469 = vmatprep.subr.bf16.mxu0 %v1357
  %1470 = vmatpush1.bf16.msra.mxu0 %v1356
  %1471 = vmatprep.subr.bf16.mxu0 %v1361
  %1472 = vmatpush1.bf16.msra.mxu0 %v1360
  %1473 = vmatprep.subr.bf16.mxu0 %v1365
  %1474 = vmatpush1.bf16.msra.mxu0 %v1364
  %1475 = vmatprep.subr.bf16.mxu0 %v1369
  %1476 = vmatpush1.bf16.msra.mxu0 %v1368
  %1477 = vmatprep.subr.bf16.mxu0 %v1373
  %1478 = vmatpush1.bf16.msra.mxu0 %v1372
  %1479 = vmatprep.subr.bf16.mxu0 %v1377
  %1480 = vmatpush1.bf16.msra.mxu0 %v1376
  %1481 = vmatprep.subr.bf16.mxu0 %v1381
  %1482 = vmatpush1.bf16.msra.mxu0 %v1380
  %1483 = vmatprep.subr.bf16.mxu0 0
  %1484 = vmatpush1.bf16.msra.mxu0 0
  %1485 = vmatprep.subr.bf16.mxu0 0
  %1486 = vmatpush1.bf16.msra.mxu0 0
  %1487 = vmatprep.subr.bf16.mxu0 0
  %1488 = vmatpush1.bf16.msra.mxu0 0
  %1489 = vmatprep.subr.bf16.mxu0 0
  %1490 = vmatpush1.bf16.msra.mxu0 0
  %1491 = vmatprep.subr.bf16.mxu0 0
  %1492 = vmatpush1.bf16.msra.mxu0 0
  %1493 = vmatprep.subr.bf16.mxu0 0
  %1494 = vmatpush1.bf16.msra.mxu0 0
  %1495 = vmatprep.subr.bf16.mxu0 0
  %1496 = vmatpush1.bf16.msra.mxu0 0
  %1497 = vmatprep.subr.bf16.mxu0 0
  %1498 = vmatpush1.bf16.msra.mxu0 0
  %1499 = vmatprep.mubr.bf16.mxu0 0
  %1500 = vmatmul.mubr.bf16.gmra.mrb[0].mxu0 %v1220
  %v1501 = vpop.f32.mrb[0].mxu0
  %v1502 = vadd.f32 0.0, %v1501
  %v1503 = vpop.f32.mrb[0].mxu0
  %v1504 = vadd.f32 0.0, %v1503
  %v1505 = vpop.f32.mrb[0].mxu0
  %v1506 = vadd.f32 0.0, %v1505
  %v1507 = vpop.f32.mrb[0].mxu0
  %v1508 = vadd.f32 0.0, %v1507
  %1509 = vmatprep.mubr.bf16.mxu0 0
  %1510 = vmatmul.mubr.bf16.gmra.mrb[0].mxu0 %v1221
  %v1511 = vpop.f32.mrb[0].mxu0
  %v1512 = vadd.f32 0.0, %v1511
  %v1513 = vpop.f32.mrb[0].mxu0
  %v1514 = vadd.f32 0.0, %v1513
  %v1515 = vpop.f32.mrb[0].mxu0
  %v1516 = vadd.f32 0.0, %v1515
  %v1517 = vpop.f32.mrb[0].mxu0
  %v1518 = vadd.f32 0.0, %v1517
  %1519 = vdwg.mxu0
  %v1520 = vld [vmem:[%s8] sm:$0x1]
  %v1521 = vld [vmem:[%s9] sm:$0x1]
  %v1522 = vld [vmem:[%s12] sm:$0xff]
  %v1523 = vld [vmem:[%s12 + $0x8] sm:$0xff]
  %v1524 = vld [vmem:[%s12 + $0x10] sm:$0xff]
  %v1525 = vld [vmem:[%s12 + $0x18] sm:$0xff]
  %v1526 = vld [vmem:[%s12 + $0x20] sm:$0xff]
  %v1527 = vld [vmem:[%s12 + $0x28] sm:$0xff]
  %v1528 = vld [vmem:[%s12 + $0x30] sm:$0xff]
  %v1529 = vld [vmem:[%s12 + $0x38] sm:$0xff]
  %v1530 = vld [vmem:[%s12 + $0x40] sm:$0xff]
  %v1531 = vld [vmem:[%s12 + $0x48] sm:$0xff]
  %v1532 = vld [vmem:[%s12 + $0x50] sm:$0xff]
  %v1533 = vld [vmem:[%s12 + $0x58] sm:$0xff]
  %v1534 = vld [vmem:[%s12 + $0x60] sm:$0xff]
  %v1535 = vld [vmem:[%s12 + $0x68] sm:$0xff]
  %v1536 = vld [vmem:[%s12 + $0x70] sm:$0xff]
  %v1537 = vld [vmem:[%s12 + $0x78] sm:$0xff]
  %v1538 = vld [vmem:[%s12 + $0x80] sm:$0xff]
  %v1539 = vld [vmem:[%s12 + $0x88] sm:$0xff]
  %v1540 = vld [vmem:[%s12 + $0x90] sm:$0xff]
  %v1541 = vld [vmem:[%s12 + $0x98] sm:$0xff]
  %v1542 = vld [vmem:[%s12 + $0xa0] sm:$0xff]
  %v1543 = vld [vmem:[%s12 + $0xa8] sm:$0xff]
  %v1544 = vld [vmem:[%s12 + $0xb0] sm:$0xff]
  %v1545 = vld [vmem:[%s12 + $0xb8] sm:$0xff]
  %v1546 = vld [vmem:[%s12 + $0xc0] sm:$0xff]
  %v1547 = vld [vmem:[%s12 + $0xc8] sm:$0xff]
  %v1548 = vld [vmem:[%s12 + $0xd0] sm:$0xff]
  %v1549 = vld [vmem:[%s12 + $0xd8] sm:$0xff]
  %v1550 = vld [vmem:[%s12 + $0xe0] sm:$0xff]
  %v1551 = vld [vmem:[%s12 + $0xe8] sm:$0xff]
  %v1552 = vld [vmem:[%s12 + $0xf0] sm:$0xff]
  %v1553 = vld [vmem:[%s12 + $0xf8] sm:$0xff]
  %v1554 = vld [vmem:[%s12 + $0x100] sm:$0xff]
  %v1555 = vld [vmem:[%s12 + $0x108] sm:$0xff]
  %v1556 = vld [vmem:[%s12 + $0x110] sm:$0xff]
  %v1557 = vld [vmem:[%s12 + $0x118] sm:$0xff]
  %v1558 = vld [vmem:[%s12 + $0x120] sm:$0xff]
  %v1559 = vld [vmem:[%s12 + $0x128] sm:$0xff]
  %v1560 = vld [vmem:[%s12 + $0x130] sm:$0xff]
  %v1561 = vld [vmem:[%s12 + $0x138] sm:$0xff]
  %v1562 = vld [vmem:[%s12 + $0x140] sm:$0xff]
  %v1563 = vld [vmem:[%s12 + $0x148] sm:$0xff]
  %v1564 = vld [vmem:[%s12 + $0x150] sm:$0xff]
  %v1565 = vld [vmem:[%s12 + $0x158] sm:$0xff]
  %v1566 = vld [vmem:[%s12 + $0x160] sm:$0xff]
  %v1567 = vld [vmem:[%s12 + $0x168] sm:$0xff]
  %v1568 = vld [vmem:[%s12 + $0x170] sm:$0xff]
  %v1569 = vld [vmem:[%s12 + $0x178] sm:$0xff]
  %v1570 = vld [vmem:[%s12 + $0x180] sm:$0xff]
  %v1571 = vld [vmem:[%s12 + $0x188] sm:$0xff]
  %v1572 = vld [vmem:[%s12 + $0x190] sm:$0xff]
  %v1573 = vld [vmem:[%s12 + $0x198] sm:$0xff]
  %v1574 = vld [vmem:[%s12 + $0x1a0] sm:$0xff]
  %v1575 = vld [vmem:[%s12 + $0x1a8] sm:$0xff]
  %v1576 = vld [vmem:[%s12 + $0x1b0] sm:$0xff]
  %v1577 = vld [vmem:[%s12 + $0x1b8] sm:$0xff]
  %v1578 = vld [vmem:[%s12 + $0x1c0] sm:$0xff]
  %v1579 = vld [vmem:[%s12 + $0x1c8] sm:$0xff]
  %v1580 = vld [vmem:[%s12 + $0x1d0] sm:$0xff]
  %v1581 = vld [vmem:[%s12 + $0x1d8] sm:$0xff]
  %v1582 = vld [vmem:[%s12 + $0x1e0] sm:$0xff]
  %v1583 = vld [vmem:[%s12 + $0x1e8] sm:$0xff]
  %v1584 = vld [vmem:[%s12 + $0x1f0] sm:$0xff]
  %v1585 = vld [vmem:[%s12 + $0x1f8] sm:$0xff]
  %v1586 = vld [vmem:[%s13] sm:$0xff]
  %v1587 = vld [vmem:[%s13 + $0x8] sm:$0xff]
  %v1588 = vld [vmem:[%s13 + $0x10] sm:$0xff]
  %v1589 = vld [vmem:[%s13 + $0x18] sm:$0xff]
  %v1590 = vld [vmem:[%s13 + $0x20] sm:$0xff]
  %v1591 = vld [vmem:[%s13 + $0x28] sm:$0xff]
  %v1592 = vld [vmem:[%s13 + $0x30] sm:$0xff]
  %v1593 = vld [vmem:[%s13 + $0x38] sm:$0xff]
  %v1594 = vld [vmem:[%s13 + $0x40] sm:$0xff]
  %v1595 = vld [vmem:[%s13 + $0x48] sm:$0xff]
  %v1596 = vld [vmem:[%s13 + $0x50] sm:$0xff]
  %v1597 = vld [vmem:[%s13 + $0x58] sm:$0xff]
  %v1598 = vld [vmem:[%s13 + $0x60] sm:$0xff]
  %v1599 = vld [vmem:[%s13 + $0x68] sm:$0xff]
  %v1600 = vld [vmem:[%s13 + $0x70] sm:$0xff]
  %v1601 = vld [vmem:[%s13 + $0x78] sm:$0xff]
  %v1602 = vadd.f32 %v1449, %v1453
  %v1603 = vadd.f32 %v1602, %v1459
  %v1604 = vadd.f32 %v1603, %v1463
  %v1605 = vrot.slane %v1604, 4
  %v1606 = vadd.f32 %v1604, %v1605
  %v1607 = vrot.slane %v1606, 2
  %v1608 = vadd.f32 %v1606, %v1607
  %v1609 = vrot.slane %v1608, 1
  %v1610 = vadd.f32 %v1608, %v1609
  %v1611 = vadd.f32 %v1451, %v1455
  %v1612 = vadd.f32 %v1611, %v1461
  %v1613 = vadd.f32 %v1612, %v1465
  %v1614 = vrot.slane %v1613, 4
  %v1615 = vadd.f32 %v1613, %v1614
  %v1616 = vrot.slane %v1615, 2
  %v1617 = vadd.f32 %v1615, %v1616
  %v1618 = vrot.slane %v1617, 1
  %v1619 = vadd.f32 %v1617, %v1618
  %v1620 = vadd.f32 %v1502, %v1506
  %v1621 = vadd.f32 %v1620, %v1512
  %v1622 = vadd.f32 %v1621, %v1516
  %v1623 = vrot.slane %v1622, 4
  %v1624 = vadd.f32 %v1622, %v1623
  %v1625 = vrot.slane %v1624, 2
  %v1626 = vadd.f32 %v1624, %v1625
  %v1627 = vrot.slane %v1626, 1
  %v1628 = vadd.f32 %v1626, %v1627
  %v1629 = vadd.f32 %v1504, %v1508
  %v1630 = vadd.f32 %v1629, %v1514
  %v1631 = vadd.f32 %v1630, %v1518
  %v1632 = vrot.slane %v1631, 4
  %v1633 = vadd.f32 %v1631, %v1632
  %v1634 = vrot.slane %v1633, 2
  %v1635 = vadd.f32 %v1633, %v1634
  %v1636 = vrot.slane %v1635, 1
  %v1637 = vadd.f32 %v1635, %v1636
  %v1638 = vmul.f32 %v1449, %v1449
  %v1639 = vmul.f32 %v1451, %v1451
  %v1640 = vmul.f32 %v1502, %v1502
  %v1641 = vmul.f32 %v1504, %v1504
  %v1642 = vmul.f32 %v1453, %v1453
  %v1643 = vmul.f32 %v1455, %v1455
  %v1644 = vmul.f32 %v1506, %v1506
  %v1645 = vmul.f32 %v1508, %v1508
  %v1646 = vmul.f32 %v1459, %v1459
  %v1647 = vmul.f32 %v1461, %v1461
  %v1648 = vmul.f32 %v1512, %v1512
  %v1649 = vmul.f32 %v1514, %v1514
  %v1650 = vmul.f32 %v1463, %v1463
  %v1651 = vmul.f32 %v1465, %v1465
  %v1652 = vmul.f32 %v1516, %v1516
  %v1653 = vmul.f32 %v1518, %v1518
  %v1654 = vadd.f32 %v1638, %v1642
  %v1655 = vadd.f32 %v1654, %v1646
  %v1656 = vadd.f32 %v1655, %v1650
  %v1657 = vrot.slane %v1656, 4
  %v1658 = vadd.f32 %v1656, %v1657
  %v1659 = vrot.slane %v1658, 2
  %v1660 = vadd.f32 %v1658, %v1659
  %v1661 = vrot.slane %v1660, 1
  %v1662 = vadd.f32 %v1660, %v1661
  %v1663 = vadd.f32 %v1639, %v1643
  %v1664 = vadd.f32 %v1663, %v1647
  %v1665 = vadd.f32 %v1664, %v1651
  %v1666 = vrot.slane %v1665, 4
  %v1667 = vadd.f32 %v1665, %v1666
  %v1668 = vrot.slane %v1667, 2
  %v1669 = vadd.f32 %v1667, %v1668
  %v1670 = vrot.slane %v1669, 1
  %v1671 = vadd.f32 %v1669, %v1670
  %v1672 = vadd.f32 %v1640, %v1644
  %v1673 = vadd.f32 %v1672, %v1648
  %v1674 = vadd.f32 %v1673, %v1652
  %v1675 = vrot.slane %v1674, 4
  %v1676 = vadd.f32 %v1674, %v1675
  %v1677 = vrot.slane %v1676, 2
  %v1678 = vadd.f32 %v1676, %v1677
  %v1679 = vrot.slane %v1678, 1
  %v1680 = vadd.f32 %v1678, %v1679
  %v1681 = vadd.f32 %v1641, %v1645
  %v1682 = vadd.f32 %v1681, %v1649
  %v1683 = vadd.f32 %v1682, %v1653
  %v1684 = vrot.slane %v1683, 4
  %v1685 = vadd.f32 %v1683, %v1684
  %v1686 = vrot.slane %v1685, 2
  %v1687 = vadd.f32 %v1685, %v1686
  %v1688 = vrot.slane %v1687, 1
  %v1689 = vadd.f32 %v1687, %v1688
  %v1690 = vsel %vm467, %v1610, %v1662
  %v1691 = vsel %vm467, %v1619, %v1671
  %v1692 = vsel %vm467, %v1628, %v1680
  %v1693 = vsel %vm467, %v1637, %v1689
  %1694 = vmatprep.subr.mxu0 0.0
  %1695 = vmatpush1.msra.mxu0 %v1522
  %1696 = vmatprep.subr.mxu0 0.0
  %1697 = vmatpush1.msra.mxu0 %v1523
  %1698 = vmatprep.subr.mxu0 0.0
  %1699 = vmatpush1.msra.mxu0 %v1524
  %1700 = vmatprep.subr.mxu0 0.0
  %1701 = vmatpush1.msra.mxu0 %v1525
  %1702 = vmatprep.subr.mxu0 0.0
  %1703 = vmatpush1.msra.mxu0 %v1526
  %1704 = vmatprep.subr.mxu0 0.0
  %1705 = vmatpush1.msra.mxu0 %v1527
  %1706 = vmatprep.subr.mxu0 0.0
  %1707 = vmatpush1.msra.mxu0 %v1528
  %1708 = vmatprep.subr.mxu0 0.0
  %1709 = vmatpush1.msra.mxu0 %v1529
  %1710 = vmatprep.subr.mxu0 0.0
  %1711 = vmatpush1.msra.mxu0 %v1530
  %1712 = vmatprep.subr.mxu0 0.0
  %1713 = vmatpush1.msra.mxu0 %v1531
  %1714 = vmatprep.subr.mxu0 0.0
  %1715 = vmatpush1.msra.mxu0 %v1532
  %1716 = vmatprep.subr.mxu0 0.0
  %1717 = vmatpush1.msra.mxu0 %v1533
  %1718 = vmatprep.subr.mxu0 0.0
  %1719 = vmatpush1.msra.mxu0 %v1534
  %1720 = vmatprep.subr.mxu0 0.0
  %1721 = vmatpush1.msra.mxu0 %v1535
  %1722 = vmatprep.subr.mxu0 0.0
  %1723 = vmatpush1.msra.mxu0 %v1536
  %1724 = vmatprep.subr.mxu0 0.0
  %1725 = vmatpush1.msra.mxu0 %v1537
  %1726 = vmatprep.subr.mxu0 0.0
  %1727 = vmatpush1.msra.mxu0 %v1538
  %1728 = vmatprep.subr.mxu0 0.0
  %1729 = vmatpush1.msra.mxu0 %v1539
  %1730 = vmatprep.subr.mxu0 0.0
  %1731 = vmatpush1.msra.mxu0 %v1540
  %1732 = vmatprep.subr.mxu0 0.0
  %1733 = vmatpush1.msra.mxu0 %v1541
  %1734 = vmatprep.subr.mxu0 0.0
  %1735 = vmatpush1.msra.mxu0 %v1542
  %1736 = vmatprep.subr.mxu0 0.0
  %1737 = vmatpush1.msra.mxu0 %v1543
  %1738 = vmatprep.subr.mxu0 0.0
  %1739 = vmatpush1.msra.mxu0 %v1544
  %1740 = vmatprep.subr.mxu0 0.0
  %1741 = vmatpush1.msra.mxu0 %v1545
  %1742 = vmatprep.subr.mxu0 0.0
  %1743 = vmatpush1.msra.mxu0 %v1546
  %1744 = vmatprep.subr.mxu0 0.0
  %1745 = vmatpush1.msra.mxu0 %v1547
  %1746 = vmatprep.subr.mxu0 0.0
  %1747 = vmatpush1.msra.mxu0 %v1548
  %1748 = vmatprep.subr.mxu0 0.0
  %1749 = vmatpush1.msra.mxu0 %v1549
  %1750 = vmatprep.subr.mxu0 0.0
  %1751 = vmatpush1.msra.mxu0 %v1550
  %1752 = vmatprep.subr.mxu0 0.0
  %1753 = vmatpush1.msra.mxu0 %v1551
  %1754 = vmatprep.subr.mxu0 0.0
  %1755 = vmatpush1.msra.mxu0 %v1552
  %1756 = vmatprep.subr.mxu0 0.0
  %1757 = vmatpush1.msra.mxu0 %v1553
  %1758 = vmatprep.mubr.f32.mxu0 %v1691
  %1759 = vmatmul.mubr.f32.gmra.mrb[0].mxu0 %v1690
  %v1760 = vpop.f32.mrb[0].mxu0
  %v1761 = vadd.f32 0.0, %v1760
  %v1762 = vpop.f32.mrb[0].mxu0
  %1763 = vdwg.mxu0
  %1764 = vmatprep.subr.mxu0 0.0
  %1765 = vmatpush1.msra.mxu0 %v1554
  %1766 = vmatprep.subr.mxu0 0.0
  %1767 = vmatpush1.msra.mxu0 %v1555
  %1768 = vmatprep.subr.mxu0 0.0
  %1769 = vmatpush1.msra.mxu0 %v1556
  %1770 = vmatprep.subr.mxu0 0.0
  %1771 = vmatpush1.msra.mxu0 %v1557
  %1772 = vmatprep.subr.mxu0 0.0
  %1773 = vmatpush1.msra.mxu0 %v1558
  %1774 = vmatprep.subr.mxu0 0.0
  %1775 = vmatpush1.msra.mxu0 %v1559
  %1776 = vmatprep.subr.mxu0 0.0
  %1777 = vmatpush1.msra.mxu0 %v1560
  %1778 = vmatprep.subr.mxu0 0.0
  %1779 = vmatpush1.msra.mxu0 %v1561
  %1780 = vmatprep.subr.mxu0 0.0
  %1781 = vmatpush1.msra.mxu0 %v1562
  %1782 = vmatprep.subr.mxu0 0.0
  %1783 = vmatpush1.msra.mxu0 %v1563
  %1784 = vmatprep.subr.mxu0 0.0
  %1785 = vmatpush1.msra.mxu0 %v1564
  %1786 = vmatprep.subr.mxu0 0.0
  %1787 = vmatpush1.msra.mxu0 %v1565
  %1788 = vmatprep.subr.mxu0 0.0
  %1789 = vmatpush1.msra.mxu0 %v1566
  %1790 = vmatprep.subr.mxu0 0.0
  %1791 = vmatpush1.msra.mxu0 %v1567
  %1792 = vmatprep.subr.mxu0 0.0
  %1793 = vmatpush1.msra.mxu0 %v1568
  %1794 = vmatprep.subr.mxu0 0.0
  %1795 = vmatpush1.msra.mxu0 %v1569
  %1796 = vmatprep.subr.mxu0 0.0
  %1797 = vmatpush1.msra.mxu0 %v1570
  %1798 = vmatprep.subr.mxu0 0.0
  %1799 = vmatpush1.msra.mxu0 %v1571
  %1800 = vmatprep.subr.mxu0 0.0
  %1801 = vmatpush1.msra.mxu0 %v1572
  %1802 = vmatprep.subr.mxu0 0.0
  %1803 = vmatpush1.msra.mxu0 %v1573
  %1804 = vmatprep.subr.mxu0 0.0
  %1805 = vmatpush1.msra.mxu0 %v1574
  %1806 = vmatprep.subr.mxu0 0.0
  %1807 = vmatpush1.msra.mxu0 %v1575
  %1808 = vmatprep.subr.mxu0 0.0
  %1809 = vmatpush1.msra.mxu0 %v1576
  %1810 = vmatprep.subr.mxu0 0.0
  %1811 = vmatpush1.msra.mxu0 %v1577
  %1812 = vmatprep.subr.mxu0 0.0
  %1813 = vmatpush1.msra.mxu0 %v1578
  %1814 = vmatprep.subr.mxu0 0.0
  %1815 = vmatpush1.msra.mxu0 %v1579
  %1816 = vmatprep.subr.mxu0 0.0
  %1817 = vmatpush1.msra.mxu0 %v1580
  %1818 = vmatprep.subr.mxu0 0.0
  %1819 = vmatpush1.msra.mxu0 %v1581
  %1820 = vmatprep.subr.mxu0 0.0
  %1821 = vmatpush1.msra.mxu0 %v1582
  %1822 = vmatprep.subr.mxu0 0.0
  %1823 = vmatpush1.msra.mxu0 %v1583
  %1824 = vmatprep.subr.mxu0 0.0
  %1825 = vmatpush1.msra.mxu0 %v1584
  %1826 = vmatprep.subr.mxu0 0.0
  %1827 = vmatpush1.msra.mxu0 %v1585
  %1828 = vmatprep.mubr.f32.mxu0 %v1693
  %1829 = vmatmul.mubr.f32.gmra.mrb[0].mxu0 %v1692
  %v1830 = vpop.f32.mrb[0].mxu0
  %v1831 = vadd.f32 %v1761, %v1830
  %v1832 = vpop.f32.mrb[0].mxu0
  %1833 = vdwg.mxu0
  %v1834 = vmul.f32 %v1831, 0.001953125
  %v1835 = vmul.f32 %v1834, %v1834
  %v1837 = vrot.slane %v1835, 7
  %v1839 = vsub.f32 %v1834, %v1837
  %v1840 = vadd.f32 %v1839, 1e-05
  %v1841 = vrsqrt.pop %v1840
  %v1844 = vunpack.c.l.s4 1966171168
  %v1845 = vunpack.c.0.s8 %v1844
  %v1846 = vlaneseq
  %v1847 = vshrl.u32 %v1846, 7
  %v1848 = vsub.s32 %v1845, %v1847
  %v1849 = vrot.slane %v1841, %v1848
  %v1850 = vcombine.high %v1849, %v1849
  %v1852 = vunpack.c.l.s4 1966171168
  %v1853 = vunpack.c.0.s8 %v1852
  %v1854 = vlaneseq
  %v1855 = vshrl.u32 %v1854, 7
  %v1856 = vsub.s32 %v1853, %v1855
  %v1857 = vrot.slane %v1850, %v1856
  %v1859 = vmul.f32 %v1520, %v1857
  %v1860 = vmul.f32 %v1834, %v1859
  %v1861 = vsub.f32 %v1521, %v1860
  %v1863 = vlaneseq
  %v1864 = vshrl.u32 %v1863, 7
  %v1865 = vsub.s32 0, %v1864
  %v1866 = vrot.slane %v1861, %v1865
  %v1868 = vsel %vm467, %v1859, %v1866
  %vm1869 = vcmask 261120
  %v1871 = vsel %vm1869, %v1868, 0
  %1873 = vmatprep.subr.mxu0 %v1587
  %1874 = vmatpush1.msra.mxu0 %v1586
  %1875 = vmatprep.subr.mxu0 %v1591
  %1876 = vmatpush1.msra.mxu0 %v1590
  %1877 = vmatprep.subr.mxu0 %v1595
  %1878 = vmatpush1.msra.mxu0 %v1594
  %1879 = vmatprep.subr.mxu0 %v1599
  %1880 = vmatpush1.msra.mxu0 %v1598
  %1881 = vmatprep.subr.mxu0 0.0
  %1882 = vmatpush1.msra.mxu0 0.0
  %1883 = vmatprep.subr.mxu0 0.0
  %1884 = vmatpush1.msra.mxu0 0.0
  %1885 = vmatprep.subr.mxu0 0.0
  %1886 = vmatpush1.msra.mxu0 0.0
  %1887 = vmatprep.subr.mxu0 0.0
  %1888 = vmatpush1.msra.mxu0 0.0
  %1889 = vmatprep.subr.mxu0 0.0
  %1890 = vmatpush1.msra.mxu0 0.0
  %1891 = vmatprep.subr.mxu0 0.0
  %1892 = vmatpush1.msra.mxu0 0.0
  %1893 = vmatprep.subr.mxu0 0.0
  %1894 = vmatpush1.msra.mxu0 0.0
  %1895 = vmatprep.subr.mxu0 0.0
  %1896 = vmatpush1.msra.mxu0 0.0
  %1897 = vmatprep.subr.mxu0 0.0
  %1898 = vmatpush1.msra.mxu0 0.0
  %1899 = vmatprep.subr.mxu0 0.0
  %1900 = vmatpush1.msra.mxu0 0.0
  %1901 = vmatprep.subr.mxu0 0.0
  %1902 = vmatpush1.msra.mxu0 0.0
  %1903 = vmatprep.subr.mxu0 0.0
  %1904 = vmatpush1.msra.mxu0 0.0
  %1905 = vmatprep.subr.mxu0 0.0
  %1906 = vmatpush1.msra.mxu0 0.0
  %1907 = vmatprep.subr.mxu0 0.0
  %1908 = vmatpush1.msra.mxu0 0.0
  %1909 = vmatprep.subr.mxu0 0.0
  %1910 = vmatpush1.msra.mxu0 0.0
  %1911 = vmatprep.subr.mxu0 0.0
  %1912 = vmatpush1.msra.mxu0 0.0
  %1913 = vmatprep.subr.mxu0 0.0
  %1914 = vmatpush1.msra.mxu0 0.0
  %1915 = vmatprep.subr.mxu0 0.0
  %1916 = vmatpush1.msra.mxu0 0.0
  %1917 = vmatprep.subr.mxu0 0.0
  %1918 = vmatpush1.msra.mxu0 0.0
  %1919 = vmatprep.subr.mxu0 0.0
  %1920 = vmatpush1.msra.mxu0 0.0
  %1921 = vmatprep.subr.mxu0 0.0
  %1922 = vmatpush1.msra.mxu0 0.0
  %1923 = vmatprep.subr.mxu0 0.0
  %1924 = vmatpush1.msra.mxu0 0.0
  %1925 = vmatprep.subr.mxu0 0.0
  %1926 = vmatpush1.msra.mxu0 0.0
  %1927 = vmatprep.subr.mxu0 0.0
  %1928 = vmatpush1.msra.mxu0 0.0
  %1929 = vmatprep.subr.mxu0 0.0
  %1930 = vmatpush1.msra.mxu0 0.0
  %1931 = vmatprep.subr.mxu0 0.0
  %1932 = vmatpush1.msra.mxu0 0.0
  %1933 = vmatprep.subr.mxu0 0.0
  %1934 = vmatpush1.msra.mxu0 0.0
  %1935 = vmatprep.subr.mxu0 0.0
  %1936 = vmatpush1.msra.mxu0 0.0
  %1937 = vmatprep.mubr.f32.mxu0 0.0
  %1938 = vmatmul.mubr.f32.gmra.mrb[0].mxu0 %v1871
  %v1939 = vpop.f32.mrb[0].mxu0
  %v1940 = vadd.f32 0.0, %v1939
  %v1941 = vpop.f32.mrb[0].mxu0
  %v1942 = vadd.f32 0.0, %v1941
  %1943 = vdwg.mxu0
  %1944 = vmatprep.subr.mxu0 %v1589
  %1945 = vmatpush1.msra.mxu0 %v1588
  %1946 = vmatprep.subr.mxu0 %v1593
  %1947 = vmatpush1.msra.mxu0 %v1592
  %1948 = vmatprep.subr.mxu0 %v1597
  %1949 = vmatpush1.msra.mxu0 %v1596
  %1950 = vmatprep.subr.mxu0 %v1601
  %1951 = vmatpush1.msra.mxu0 %v1600
  %1952 = vmatprep.subr.mxu0 0.0
  %1953 = vmatpush1.msra.mxu0 0.0
  %1954 = vmatprep.subr.mxu0 0.0
  %1955 = vmatpush1.msra.mxu0 0.0
  %1956 = vmatprep.subr.mxu0 0.0
  %1957 = vmatpush1.msra.mxu0 0.0
  %1958 = vmatprep.subr.mxu0 0.0
  %1959 = vmatpush1.msra.mxu0 0.0
  %1960 = vmatprep.subr.mxu0 0.0
  %1961 = vmatpush1.msra.mxu0 0.0
  %1962 = vmatprep.subr.mxu0 0.0
  %1963 = vmatpush1.msra.mxu0 0.0
  %1964 = vmatprep.subr.mxu0 0.0
  %1965 = vmatpush1.msra.mxu0 0.0
  %1966 = vmatprep.subr.mxu0 0.0
  %1967 = vmatpush1.msra.mxu0 0.0
  %1968 = vmatprep.subr.mxu0 0.0
  %1969 = vmatpush1.msra.mxu0 0.0
  %1970 = vmatprep.subr.mxu0 0.0
  %1971 = vmatpush1.msra.mxu0 0.0
  %1972 = vmatprep.subr.mxu0 0.0
  %1973 = vmatpush1.msra.mxu0 0.0
  %1974 = vmatprep.subr.mxu0 0.0
  %1975 = vmatpush1.msra.mxu0 0.0
  %1976 = vmatprep.subr.mxu0 0.0
  %1977 = vmatpush1.msra.mxu0 0.0
  %1978 = vmatprep.subr.mxu0 0.0
  %1979 = vmatpush1.msra.mxu0 0.0
  %1980 = vmatprep.subr.mxu0 0.0
  %1981 = vmatpush1.msra.mxu0 0.0
  %1982 = vmatprep.subr.mxu0 0.0
  %1983 = vmatpush1.msra.mxu0 0.0
  %1984 = vmatprep.subr.mxu0 0.0
  %1985 = vmatpush1.msra.mxu0 0.0
  %1986 = vmatprep.subr.mxu0 0.0
  %1987 = vmatpush1.msra.mxu0 0.0
  %1988 = vmatprep.subr.mxu0 0.0
  %1989 = vmatpush1.msra.mxu0 0.0
  %1990 = vmatprep.subr.mxu0 0.0
  %1991 = vmatpush1.msra.mxu0 0.0
  %1992 = vmatprep.subr.mxu0 0.0
  %1993 = vmatpush1.msra.mxu0 0.0
  %1994 = vmatprep.subr.mxu0 0.0
  %1995 = vmatpush1.msra.mxu0 0.0
  %1996 = vmatprep.subr.mxu0 0.0
  %1997 = vmatpush1.msra.mxu0 0.0
  %1998 = vmatprep.subr.mxu0 0.0
  %1999 = vmatpush1.msra.mxu0 0.0
  %2000 = vmatprep.subr.mxu0 0.0
  %2001 = vmatpush1.msra.mxu0 0.0
  %2002 = vmatprep.subr.mxu0 0.0
  %2003 = vmatpush1.msra.mxu0 0.0
  %2004 = vmatprep.subr.mxu0 0.0
  %2005 = vmatpush1.msra.mxu0 0.0
  %2006 = vmatprep.subr.mxu0 0.0
  %2007 = vmatpush1.msra.mxu0 0.0
  %2008 = vmatprep.mubr.f32.mxu0 0.0
  %2009 = vmatmul.mubr.f32.gmra.mrb[0].mxu0 %v1871
  %v2010 = vpop.f32.mrb[0].mxu0
  %v2011 = vadd.f32 0.0, %v2010
  %v2012 = vpop.f32.mrb[0].mxu0
  %v2013 = vadd.f32 0.0, %v2012
  %2014 = vdwg.mxu0
  %v2015 = vlaneseq
  %v2016 = vshrl.u32 %v2015, 7
  %v2017 = vsub.s32 0, %v2016
  %v2018 = vrot.slane %v1940, %v2017
  %v2019 = vlaneseq
  %v2020 = vshrl.u32 %v2019, 7
  %v2021 = vsub.s32 0, %v2020
  %v2022 = vrot.slane %v1942, %v2021
  %v2023 = vlaneseq
  %v2024 = vshrl.u32 %v2023, 7
  %v2025 = vsub.s32 0, %v2024
  %v2026 = vrot.slane %v2011, %v2025
  %v2027 = vlaneseq
  %v2028 = vshrl.u32 %v2027, 7
  %v2029 = vsub.s32 0, %v2028
  %v2030 = vrot.slane %v2013, %v2029
  %v2031 = vmul.f32 %v1449, %v2018
  %v2032 = vmul.f32 %v1451, %v2022
  %v2033 = vmul.f32 %v1502, %v2026
  %v2034 = vmul.f32 %v1504, %v2030
  %v2035 = vmul.f32 %v1453, %v2018
  %v2036 = vmul.f32 %v1455, %v2022
  %v2037 = vmul.f32 %v1506, %v2026
  %v2038 = vmul.f32 %v1508, %v2030
  %v2039 = vmul.f32 %v1459, %v2018
  %v2040 = vmul.f32 %v1461, %v2022
  %v2041 = vmul.f32 %v1512, %v2026
  %v2042 = vmul.f32 %v1514, %v2030
  %v2043 = vmul.f32 %v1463, %v2018
  %v2044 = vmul.f32 %v1465, %v2022
  %v2045 = vmul.f32 %v1516, %v2026
  %v2046 = vmul.f32 %v1518, %v2030
  %v2047 = vlaneseq
  %v2048 = vshrl.u32 %v2047, 7
  %v2049 = vsub.s32 1, %v2048
  %v2050 = vrot.slane %v1940, %v2049
  %v2051 = vlaneseq
  %v2052 = vshrl.u32 %v2051, 7
  %v2053 = vsub.s32 1, %v2052
  %v2054 = vrot.slane %v1942, %v2053
  %v2055 = vlaneseq
  %v2056 = vshrl.u32 %v2055, 7
  %v2057 = vsub.s32 1, %v2056
  %v2058 = vrot.slane %v2011, %v2057
  %v2059 = vlaneseq
  %v2060 = vshrl.u32 %v2059, 7
  %v2061 = vsub.s32 1, %v2060
  %v2062 = vrot.slane %v2013, %v2061
  %v2063 = vadd.f32 %v2031, %v2050
  %v2064 = vadd.f32 %v2032, %v2054
  %v2065 = vadd.f32 %v2033, %v2058
  %v2066 = vadd.f32 %v2034, %v2062
  %v2067 = vadd.f32 %v2035, %v2050
  %v2068 = vadd.f32 %v2036, %v2054
  %v2069 = vadd.f32 %v2037, %v2058
  %v2070 = vadd.f32 %v2038, %v2062
  %v2071 = vadd.f32 %v2039, %v2050
  %v2072 = vadd.f32 %v2040, %v2054
  %v2073 = vadd.f32 %v2041, %v2058
  %v2074 = vadd.f32 %v2042, %v2062
  %v2075 = vadd.f32 %v2043, %v2050
  %v2076 = vadd.f32 %v2044, %v2054
  %v2077 = vadd.f32 %v2045, %v2058
  %v2078 = vadd.f32 %v2046, %v2062
  %v2079 = vadd.f32 %v2063, %v48
  %v2080 = vadd.f32 %v2064, %v49
  %v2081 = vadd.f32 %v2065, %v50
  %v2082 = vadd.f32 %v2066, %v51
  %v2083 = vadd.f32 %v2067, %v52
  %v2084 = vadd.f32 %v2068, %v53
  %v2085 = vadd.f32 %v2069, %v54
  %v2086 = vadd.f32 %v2070, %v55
  %v2087 = vadd.f32 %v2071, %v56
  %v2088 = vadd.f32 %v2072, %v57
  %v2089 = vadd.f32 %v2073, %v58
  %v2090 = vadd.f32 %v2074, %v59
  %v2091 = vadd.f32 %v2075, %v60
  %v2092 = vadd.f32 %v2076, %v61
  %v2093 = vadd.f32 %v2077, %v62
  %v2094 = vadd.f32 %v2078, %v63
  %v2095 = vmax.f32 %v2079, 0.0
  %v2096 = vmax.f32 %v2080, 0.0
  %v2097 = vmax.f32 %v2081, 0.0
  %v2098 = vmax.f32 %v2082, 0.0
  %v2099 = vmax.f32 %v2083, 0.0
  %v2100 = vmax.f32 %v2084, 0.0
  %v2101 = vmax.f32 %v2085, 0.0
  %v2102 = vmax.f32 %v2086, 0.0
  %v2103 = vmax.f32 %v2087, 0.0
  %v2104 = vmax.f32 %v2088, 0.0
  %v2105 = vmax.f32 %v2089, 0.0
  %v2106 = vmax.f32 %v2090, 0.0
  %v2107 = vmax.f32 %v2091, 0.0
  %v2108 = vmax.f32 %v2092, 0.0
  %v2109 = vmax.f32 %v2093, 0.0
  %v2110 = vmax.f32 %v2094, 0.0
  %2111 = vst [vmem:[%s14] sm:$0xff] %v2095
  %2112 = vst [vmem:[%s14 + $0x8] sm:$0xff] %v2096
  %2113 = vst [vmem:[%s14 + $0x10] sm:$0xff] %v2097
  %2114 = vst [vmem:[%s14 + $0x18] sm:$0xff] %v2098
  %2115 = vst [vmem:[%s14 + $0x20] sm:$0xff] %v2099
  %2116 = vst [vmem:[%s14 + $0x28] sm:$0xff] %v2100
  %2117 = vst [vmem:[%s14 + $0x30] sm:$0xff] %v2101
  %2118 = vst [vmem:[%s14 + $0x38] sm:$0xff] %v2102
  %2119 = vst [vmem:[%s14 + $0x40] sm:$0xff] %v2103
  %2120 = vst [vmem:[%s14 + $0x48] sm:$0xff] %v2104
  %2121 = vst [vmem:[%s14 + $0x50] sm:$0xff] %v2105
  %2122 = vst [vmem:[%s14 + $0x58] sm:$0xff] %v2106
  %2123 = vst [vmem:[%s14 + $0x60] sm:$0xff] %v2107
  %2124 = vst [vmem:[%s14 + $0x68] sm:$0xff] %v2108
  %2125 = vst [vmem:[%s14 + $0x70] sm:$0xff] %v2109
  %2126 = vst [vmem:[%s14 + $0x78] sm:$0xff] %v2110
  // Predicated region
  $region58: #{bottleneck_forward.1} parent=0 // pred_check
    _
  $region59: #{bottleneck_forward.1} parent=0 // pred_check_branch
    %2128 = sbr.rel (0) target = $region61
  $region60: #{bottleneck_forward.1} parent=0 // pred_region
    _
  $region61: #{bottleneck_forward.1} parent=0 // pred_fallthru
    _
  // Predicated region
  $region62: #{bottleneck_forward.1} parent=0 // pred_check
    _
  $region63: #{bottleneck_forward.1} parent=0 // pred_check_branch
    %2130 = sbr.rel (0) target = $region65
  $region64: #{bottleneck_forward.1} parent=0 // pred_region
    _
  $region65: #{bottleneck_forward.1} parent=0 // pred_fallthru
    _

</llo_original>
